<compile_context>
chip_gen: v7x
topology: tpu7x:2x2x1
jax: 0.10.0
libtpu: 0.0.40
codegen_flags: <defaults>
</compile_context>

<pallas_src>
import math

import jax
import jax.numpy as jnp
import numpy as np
from jax.experimental import pallas as pl
from jax.experimental.pallas import tpu as pltpu  # noqa: F401  (TPU backend)

# ----------------------------- model dims -----------------------------------
L = 8           # sequence length
N = 2           # batch
E = 32          # d_model
H = 4           # nhead
DH = E // H     # head dim
FF = 64         # dim_feedforward
NL = N * L      # fused row count
EPS = 1e-5

# ------------------------- packed parameter slab ------------------------------
SLAB_W = 192                    # lane width: [Q(32) | K(32) | V'(H*E=128)]
R_WQKV = 0                      # rows   0: 32  fused [Q*scale | K | V@Wo] weights
R_W1G = 32                      # rows  32: 64  fused [W1 | Wg] weights (96 cols)
R_W2 = 64                       # rows  64:128  W2 weights (32 cols)
R_MASK = 128                    # rows 128:144  additive block-diag attention mask
R_VEC = 144                     # rows 144:152  bias / LayerNorm vectors
SLAB_R = 152
# vector rows inside the R_VEC block
V_BQK, V_BO, V_B1G, V_B2, V_G1, V_BE1, V_G2, V_BE2 = range(8)


# ------------------------------ kernel ---------------------------------------
def _gated_encoder_kernel(x_ref, slab_ref, o_ref):
    x = x_ref[...]                                            # (NL, E)
    vecs = slab_ref[pl.ds(R_VEC, 8), :]                       # (8, SLAB_W)

    # ---- fused [Q*scale | K | V'] projection: ONE lane-dense matmul ----
    qkv = jnp.dot(x, slab_ref[pl.ds(R_WQKV, E), :],
                  preferred_element_type=jnp.float32)         # (NL, 192)
    qkv = qkv + vecs[V_BQK:V_BQK + 1, :]                      # [bq*scale | bk | 0]

    # ---- per-head attention; Wo already folded into V' ----
    mask = slab_ref[pl.ds(R_MASK, NL), pl.ds(0, NL)]          # (NL, NL) additive
    attn = jnp.zeros((NL, E), jnp.float32)
    for h in range(H):
        qh = qkv[:, h * DH:(h + 1) * DH]                      # (NL, DH)
        kh = qkv[:, E + h * DH:E + (h + 1) * DH]              # (NL, DH)
        vh = qkv[:, 2 * E + h * E:2 * E + (h + 1) * E]        # (NL, E) = V_h @ Wo_h
        s = jax.lax.dot_general(qh, kh, (((1,), (1,)), ((), ())),
                                preferred_element_type=jnp.float32) + mask
        s = s - jnp.max(s, axis=-1, keepdims=True)
        p = jnp.exp(s)
        p = p * pl.reciprocal(jnp.sum(p, axis=-1, keepdims=True), approx=False)
        attn = attn + jnp.dot(p, vh, preferred_element_type=jnp.float32)
    attn = attn + vecs[V_BO:V_BO + 1, :E]                     # bo + bv @ Wo

    # ---- residual + LayerNorm 1 ----
    s1 = x + attn
    mu = jnp.mean(s1, axis=-1, keepdims=True)
    var = jnp.mean(jnp.square(s1 - mu), axis=-1, keepdims=True)
    s1 = (s1 - mu) * jax.lax.rsqrt(var + EPS)
    s1 = s1 * vecs[V_G1:V_G1 + 1, :E] + vecs[V_BE1:V_BE1 + 1, :E]

    # ---- gated feed-forward: fused [linear1 | gate] matmul ----
    hcomb = jnp.dot(s1, slab_ref[pl.ds(R_W1G, E), pl.ds(0, FF + E)],
                    preferred_element_type=jnp.float32)       # (NL, 96)
    hcomb = hcomb + vecs[V_B1G:V_B1G + 1, :FF + E]
    h1 = jnp.maximum(hcomb[:, :FF], 0.0)
    gate = jax.nn.sigmoid(hcomb[:, FF:FF + E])
    s2 = jnp.dot(h1, slab_ref[pl.ds(R_W2, FF), pl.ds(0, E)],
                 preferred_element_type=jnp.float32)
    s2 = s2 + vecs[V_B2:V_B2 + 1, :E]
    s3 = s1 + s2 * gate

    # ---- LayerNorm 2 ----
    mu = jnp.mean(s3, axis=-1, keepdims=True)
    var = jnp.mean(jnp.square(s3 - mu), axis=-1, keepdims=True)
    out = (s3 - mu) * jax.lax.rsqrt(var + EPS)
    out = out * vecs[V_G2:V_G2 + 1, :E] + vecs[V_BE2:V_BE2 + 1, :E]

    # (16,32) masked store — cheaper than an in-kernel relayout to 128 lanes.
    o_ref[...] = out.astype(o_ref.dtype)


# --------------------------- parameter packing --------------------------------
def pack_params(p):
    """Pack the 15 PyTorch-style parameters + attention mask into ONE slab."""
    scale = 1.0 / math.sqrt(DH)
    wq = p["wqkv"][:, 0:E] * scale
    wk = p["wqkv"][:, E:2 * E]
    wv = p["wqkv"][:, 2 * E:3 * E]
    bq = p["bqkv"][0, 0:E] * scale
    bk = p["bqkv"][0, E:2 * E]
    bv = p["bqkv"][0, 2 * E:3 * E]

    # Fold the output projection into V per head (exact: softmax rows sum to 1).
    wvp = jnp.concatenate(
        [wv[:, h * DH:(h + 1) * DH] @ p["wo"][h * DH:(h + 1) * DH, :]
         for h in range(H)], axis=-1)                          # (E, H*E)
    bo_total = p["bo"][0] + bv @ p["wo"]                       # (E,)

    wqkv_fused = jnp.concatenate([wq, wk, wvp], axis=-1)       # (E, 192)

    slab = jnp.zeros((SLAB_R, SLAB_W), jnp.float32)
    slab = slab.at[R_WQKV:R_WQKV + E, :].set(wqkv_fused)
    slab = slab.at[R_W1G:R_W1G + E, 0:FF].set(p["w1"])
    slab = slab.at[R_W1G:R_W1G + E, FF:FF + E].set(p["wg"])
    slab = slab.at[R_W2:R_W2 + FF, 0:E].set(p["w2"])

    # additive block-diagonal attention mask: flattened row r -> batch r % N
    idx = jnp.arange(NL)
    same = (idx[:, None] % N) == (idx[None, :] % N)
    slab = slab.at[R_MASK:R_MASK + NL, 0:NL].set(
        jnp.where(same, 0.0, -1e30).astype(jnp.float32))

    vr = R_VEC
    slab = slab.at[vr + V_BQK, 0:E].set(bq)
    slab = slab.at[vr + V_BQK, E:2 * E].set(bk)
    slab = slab.at[vr + V_BO, 0:E].set(bo_total)
    slab = slab.at[vr + V_B1G, 0:FF].set(p["b1"][0])
    slab = slab.at[vr + V_B1G, FF:FF + E].set(p["bg"][0])
    slab = slab.at[vr + V_B2, 0:E].set(p["b2"][0])
    slab = slab.at[vr + V_G1, 0:E].set(p["g1"][0])
    slab = slab.at[vr + V_BE1, 0:E].set(p["be1"][0])
    slab = slab.at[vr + V_G2, 0:E].set(p["g2"][0])
    slab = slab.at[vr + V_BE2, 0:E].set(p["be2"][0])
    return slab


# ------------------------------ wrapper --------------------------------------
def gated_transformer_encoder_layer(src, slab):
    """src: (L, N, E) float32 -> (L, N, E) float32."""
    x2d = src.reshape(NL, E)           # row-major flatten, row r -> batch r % N
    out = pl.pallas_call(
        _gated_encoder_kernel,
        out_shape=jax.ShapeDtypeStruct((NL, E), jnp.float32),
        # no grid: single invocation, whole operands resident in VMEM
    )(x2d, slab)
    return out.reshape(L, N, E)


# ------------------------- pure-JAX reference ---------------------------------
def reference(src, p):
    x = jnp.transpose(src, (1, 0, 2))                    # (N, L, E)

    def per_batch(xb):
        qkv = xb @ p["wqkv"] + p["bqkv"][0]
        q, k, v = qkv[:, :E], qkv[:, E:2 * E], qkv[:, 2 * E:]
        outs = []
        for h in range(H):
            qh = q[:, h * DH:(h + 1) * DH] / math.sqrt(DH)
            kh = k[:, h * DH:(h + 1) * DH]
            vh = v[:, h * DH:(h + 1) * DH]
            s = qh @ kh.T
            pr = jax.nn.softmax(s, axis=-1)
            outs.append(pr @ vh)
        attn = jnp.concatenate(outs, axis=-1) @ p["wo"] + p["bo"][0]
        s1 = xb + attn
        mu = jnp.mean(s1, -1, keepdims=True)
        var = jnp.mean((s1 - mu) ** 2, -1, keepdims=True)
        s1 = (s1 - mu) / jnp.sqrt(var + EPS) * p["g1"][0] + p["be1"][0]
        h1 = jnp.maximum(s1 @ p["w1"] + p["b1"][0], 0.0)
        s2 = h1 @ p["w2"] + p["b2"][0]
        gate = jax.nn.sigmoid(s1 @ p["wg"] + p["bg"][0])
        s3 = s1 + s2 * gate
        mu = jnp.mean(s3, -1, keepdims=True)
        var = jnp.mean((s3 - mu) ** 2, -1, keepdims=True)
        return (s3 - mu) / jnp.sqrt(var + EPS) * p["g2"][0] + p["be2"][0]

    return jnp.transpose(jax.vmap(per_batch)(x), (1, 0, 2))


# ------------------------------ main ------------------------------------------
if __name__ == "__main__":
    key = jax.random.PRNGKey(0)
    ks = jax.random.split(key, 16)

    def rnd(k, shape, s=0.1):
        return (s * jax.random.normal(k, shape)).astype(jnp.float32)

    # Weights stored pre-transposed: y = x @ W (+ b), W has shape (in, out).
    params = {
        "wqkv": rnd(ks[0], (E, 3 * E)), "bqkv": rnd(ks[1], (1, 3 * E)),
        "wo":   rnd(ks[2], (E, E)),     "bo":   rnd(ks[3], (1, E)),
        "w1":   rnd(ks[4], (E, FF)),    "b1":   rnd(ks[5], (1, FF)),
        "w2":   rnd(ks[6], (FF, E)),    "b2":   rnd(ks[7], (1, E)),
        "wg":   rnd(ks[8], (E, E)),     "bg":   rnd(ks[9], (1, E)),
        "g1":  (1.0 + rnd(ks[10], (1, E))), "be1": rnd(ks[11], (1, E)),
        "g2":  (1.0 + rnd(ks[12], (1, E))), "be2": rnd(ks[13], (1, E)),
    }

    src = jax.random.normal(ks[14], (L, N, E), dtype=jnp.float32)

    slab = jax.block_until_ready(pack_params(params))

    out = gated_transformer_encoder_layer(src, slab)
    out = jax.block_until_ready(out)

    ref = jax.block_until_ready(reference(src, params))
    np.testing.assert_allclose(np.asarray(out), np.asarray(ref),
                               rtol=1e-4, atol=1e-4)
    print("KERNEL_OK")
</pallas_src>

<mosaic_0001>
module attributes {stable_mosaic.version = 11 : i64} {
  func.func @_gated_encoder_kernel(%arg0: memref<16x32xf32, #tpu.memory_space<vmem>>, %arg1: memref<152x192xf32, #tpu.memory_space<vmem>>, %arg2: memref<16x32xf32, #tpu.memory_space<vmem>>) attributes {dimension_semantics = [], scalar_prefetch = 0 : i64, scratch_operands = 0 : i64, tpu.core_type = #tpu.core_type<tc>} {
    %c0 = arith.constant 0 : index
    %c0_0 = arith.constant 0 : index
    %0 = vector.load %arg0[%c0, %c0_0] : memref<16x32xf32, #tpu.memory_space<vmem>>, vector<16x32xf32>
    %c144 = arith.constant 144 : index
    %c0_1 = arith.constant 0 : index
    %1 = vector.load %arg1[%c144, %c0_1] : memref<152x192xf32, #tpu.memory_space<vmem>>, vector<8x192xf32>
    %c0_2 = arith.constant 0 : index
    %c0_3 = arith.constant 0 : index
    %2 = vector.load %arg1[%c0_2, %c0_3] : memref<152x192xf32, #tpu.memory_space<vmem>>, vector<32x192xf32>
    %cst = arith.constant dense<0.000000e+00> : vector<16x192xf32>
    %3 = tpu.matmul %0, %2, %cst {dimension_numbers = #tpu.dot_dimension_numbers<[1], [0], [0], [1], [0, 0, 1, 1], [], []>} : vector<16x32xf32>, vector<32x192xf32>, vector<16x192xf32> -> vector<16x192xf32>
    %4 = vector.extract_strided_slice %1 {offsets = [0, 0], sizes = [1, 192], strides = [1, 1]} : vector<8x192xf32> to vector<1x192xf32>
    %5 = vector.broadcast %4 : vector<1x192xf32> to vector<16x192xf32>
    %6 = arith.addf %3, %5 : vector<16x192xf32>
    %c128 = arith.constant 128 : index
    %c0_4 = arith.constant 0 : index
    %7 = vector.load %arg1[%c128, %c0_4] : memref<152x192xf32, #tpu.memory_space<vmem>>, vector<16x16xf32>
    %cst_5 = arith.constant 0.000000e+00 : f32
    %8 = vector.broadcast %cst_5 : f32 to vector<16x32xf32>
    %9 = vector.extract_strided_slice %6 {offsets = [0, 0], sizes = [16, 8], strides = [1, 1]} : vector<16x192xf32> to vector<16x8xf32>
    %10 = vector.extract_strided_slice %6 {offsets = [0, 32], sizes = [16, 8], strides = [1, 1]} : vector<16x192xf32> to vector<16x8xf32>
    %11 = vector.extract_strided_slice %6 {offsets = [0, 64], sizes = [16, 32], strides = [1, 1]} : vector<16x192xf32> to vector<16x32xf32>
    %cst_6 = arith.constant dense<0.000000e+00> : vector<16x16xf32>
    %12 = tpu.matmul %9, %10, %cst_6 {dimension_numbers = #tpu.dot_dimension_numbers<[1], [1], [0], [0], [0, 0, 1, 0], [], []>} : vector<16x8xf32>, vector<16x8xf32>, vector<16x16xf32> -> vector<16x16xf32>
    %13 = arith.addf %12, %7 : vector<16x16xf32>
    %cst_7 = arith.constant dense<0xFF800000> : vector<16xf32>
    %14 = vector.multi_reduction <maximumf>, %13, %cst_7 [1] : vector<16x16xf32> to vector<16xf32>
    %15 = vector.shape_cast %14 : vector<16xf32> to vector<16x1xf32>
    %16 = vector.broadcast %15 : vector<16x1xf32> to vector<16x16xf32>
    %17 = arith.subf %13, %16 : vector<16x16xf32>
    %18 = math.exp %17 : vector<16x16xf32>
    %cst_8 = arith.constant dense<0.000000e+00> : vector<16xf32>
    %19 = vector.multi_reduction <add>, %18, %cst_8 [1] : vector<16x16xf32> to vector<16xf32>
    %20 = vector.shape_cast %19 : vector<16xf32> to vector<16x1xf32>
    %21 = tpu.reciprocal %20 : vector<16x1xf32> -> vector<16x1xf32>
    %22 = vector.broadcast %21 : vector<16x1xf32> to vector<16x16xf32>
    %23 = arith.mulf %18, %22 : vector<16x16xf32>
    %cst_9 = arith.constant dense<0.000000e+00> : vector<16x32xf32>
    %24 = tpu.matmul %23, %11, %cst_9 {dimension_numbers = #tpu.dot_dimension_numbers<[1], [0], [0], [1], [0, 0, 1, 1], [], []>} : vector<16x16xf32>, vector<16x32xf32>, vector<16x32xf32> -> vector<16x32xf32>
    %25 = arith.addf %8, %24 : vector<16x32xf32>
    %26 = vector.extract_strided_slice %6 {offsets = [0, 8], sizes = [16, 8], strides = [1, 1]} : vector<16x192xf32> to vector<16x8xf32>
    %27 = vector.extract_strided_slice %6 {offsets = [0, 40], sizes = [16, 8], strides = [1, 1]} : vector<16x192xf32> to vector<16x8xf32>
    %28 = vector.extract_strided_slice %6 {offsets = [0, 96], sizes = [16, 32], strides = [1, 1]} : vector<16x192xf32> to vector<16x32xf32>
    %cst_10 = arith.constant dense<0.000000e+00> : vector<16x16xf32>
    %29 = tpu.matmul %26, %27, %cst_10 {dimension_numbers = #tpu.dot_dimension_numbers<[1], [1], [0], [0], [0, 0, 1, 0], [], []>} : vector<16x8xf32>, vector<16x8xf32>, vector<16x16xf32> -> vector<16x16xf32>
    %30 = arith.addf %29, %7 : vector<16x16xf32>
    %cst_11 = arith.constant dense<0xFF800000> : vector<16xf32>
    %31 = vector.multi_reduction <maximumf>, %30, %cst_11 [1] : vector<16x16xf32> to vector<16xf32>
    %32 = vector.shape_cast %31 : vector<16xf32> to vector<16x1xf32>
    %33 = vector.broadcast %32 : vector<16x1xf32> to vector<16x16xf32>
    %34 = arith.subf %30, %33 : vector<16x16xf32>
    %35 = math.exp %34 : vector<16x16xf32>
    %cst_12 = arith.constant dense<0.000000e+00> : vector<16xf32>
    %36 = vector.multi_reduction <add>, %35, %cst_12 [1] : vector<16x16xf32> to vector<16xf32>
    %37 = vector.shape_cast %36 : vector<16xf32> to vector<16x1xf32>
    %38 = tpu.reciprocal %37 : vector<16x1xf32> -> vector<16x1xf32>
    %39 = vector.broadcast %38 : vector<16x1xf32> to vector<16x16xf32>
    %40 = arith.mulf %35, %39 : vector<16x16xf32>
    %cst_13 = arith.constant dense<0.000000e+00> : vector<16x32xf32>
    %41 = tpu.matmul %40, %28, %cst_13 {dimension_numbers = #tpu.dot_dimension_numbers<[1], [0], [0], [1], [0, 0, 1, 1], [], []>} : vector<16x16xf32>, vector<16x32xf32>, vector<16x32xf32> -> vector<16x32xf32>
    %42 = arith.addf %25, %41 : vector<16x32xf32>
    %43 = vector.extract_strided_slice %6 {offsets = [0, 16], sizes = [16, 8], strides = [1, 1]} : vector<16x192xf32> to vector<16x8xf32>
    %44 = vector.extract_strided_slice %6 {offsets = [0, 48], sizes = [16, 8], strides = [1, 1]} : vector<16x192xf32> to vector<16x8xf32>
    %45 = vector.extract_strided_slice %6 {offsets = [0, 128], sizes = [16, 32], strides = [1, 1]} : vector<16x192xf32> to vector<16x32xf32>
    %cst_14 = arith.constant dense<0.000000e+00> : vector<16x16xf32>
    %46 = tpu.matmul %43, %44, %cst_14 {dimension_numbers = #tpu.dot_dimension_numbers<[1], [1], [0], [0], [0, 0, 1, 0], [], []>} : vector<16x8xf32>, vector<16x8xf32>, vector<16x16xf32> -> vector<16x16xf32>
    %47 = arith.addf %46, %7 : vector<16x16xf32>
    %cst_15 = arith.constant dense<0xFF800000> : vector<16xf32>
    %48 = vector.multi_reduction <maximumf>, %47, %cst_15 [1] : vector<16x16xf32> to vector<16xf32>
    %49 = vector.shape_cast %48 : vector<16xf32> to vector<16x1xf32>
    %50 = vector.broadcast %49 : vector<16x1xf32> to vector<16x16xf32>
    %51 = arith.subf %47, %50 : vector<16x16xf32>
    %52 = math.exp %51 : vector<16x16xf32>
    %cst_16 = arith.constant dense<0.000000e+00> : vector<16xf32>
    %53 = vector.multi_reduction <add>, %52, %cst_16 [1] : vector<16x16xf32> to vector<16xf32>
    %54 = vector.shape_cast %53 : vector<16xf32> to vector<16x1xf32>
    %55 = tpu.reciprocal %54 : vector<16x1xf32> -> vector<16x1xf32>
    %56 = vector.broadcast %55 : vector<16x1xf32> to vector<16x16xf32>
    %57 = arith.mulf %52, %56 : vector<16x16xf32>
    %cst_17 = arith.constant dense<0.000000e+00> : vector<16x32xf32>
    %58 = tpu.matmul %57, %45, %cst_17 {dimension_numbers = #tpu.dot_dimension_numbers<[1], [0], [0], [1], [0, 0, 1, 1], [], []>} : vector<16x16xf32>, vector<16x32xf32>, vector<16x32xf32> -> vector<16x32xf32>
    %59 = arith.addf %42, %58 : vector<16x32xf32>
    %60 = vector.extract_strided_slice %6 {offsets = [0, 24], sizes = [16, 8], strides = [1, 1]} : vector<16x192xf32> to vector<16x8xf32>
    %61 = vector.extract_strided_slice %6 {offsets = [0, 56], sizes = [16, 8], strides = [1, 1]} : vector<16x192xf32> to vector<16x8xf32>
    %62 = vector.extract_strided_slice %6 {offsets = [0, 160], sizes = [16, 32], strides = [1, 1]} : vector<16x192xf32> to vector<16x32xf32>
    %cst_18 = arith.constant dense<0.000000e+00> : vector<16x16xf32>
    %63 = tpu.matmul %60, %61, %cst_18 {dimension_numbers = #tpu.dot_dimension_numbers<[1], [1], [0], [0], [0, 0, 1, 0], [], []>} : vector<16x8xf32>, vector<16x8xf32>, vector<16x16xf32> -> vector<16x16xf32>
    %64 = arith.addf %63, %7 : vector<16x16xf32>
    %cst_19 = arith.constant dense<0xFF800000> : vector<16xf32>
    %65 = vector.multi_reduction <maximumf>, %64, %cst_19 [1] : vector<16x16xf32> to vector<16xf32>
    %66 = vector.shape_cast %65 : vector<16xf32> to vector<16x1xf32>
    %67 = vector.broadcast %66 : vector<16x1xf32> to vector<16x16xf32>
    %68 = arith.subf %64, %67 : vector<16x16xf32>
    %69 = math.exp %68 : vector<16x16xf32>
    %cst_20 = arith.constant dense<0.000000e+00> : vector<16xf32>
    %70 = vector.multi_reduction <add>, %69, %cst_20 [1] : vector<16x16xf32> to vector<16xf32>
    %71 = vector.shape_cast %70 : vector<16xf32> to vector<16x1xf32>
    %72 = tpu.reciprocal %71 : vector<16x1xf32> -> vector<16x1xf32>
    %73 = vector.broadcast %72 : vector<16x1xf32> to vector<16x16xf32>
    %74 = arith.mulf %69, %73 : vector<16x16xf32>
    %cst_21 = arith.constant dense<0.000000e+00> : vector<16x32xf32>
    %75 = tpu.matmul %74, %62, %cst_21 {dimension_numbers = #tpu.dot_dimension_numbers<[1], [0], [0], [1], [0, 0, 1, 1], [], []>} : vector<16x16xf32>, vector<16x32xf32>, vector<16x32xf32> -> vector<16x32xf32>
    %76 = arith.addf %59, %75 : vector<16x32xf32>
    %77 = vector.extract_strided_slice %1 {offsets = [1, 0], sizes = [1, 32], strides = [1, 1]} : vector<8x192xf32> to vector<1x32xf32>
    %78 = vector.broadcast %77 : vector<1x32xf32> to vector<16x32xf32>
    %79 = arith.addf %76, %78 : vector<16x32xf32>
    %80 = arith.addf %0, %79 : vector<16x32xf32>
    %cst_22 = arith.constant dense<0.000000e+00> : vector<16xf32>
    %81 = vector.multi_reduction <add>, %80, %cst_22 [1] : vector<16x32xf32> to vector<16xf32>
    %82 = vector.shape_cast %81 : vector<16xf32> to vector<16x1xf32>
    %cst_23 = arith.constant 3.200000e+01 : f32
    %83 = vector.broadcast %cst_23 : f32 to vector<16x1xf32>
    %84 = arith.divf %82, %83 : vector<16x1xf32>
    %85 = vector.broadcast %84 : vector<16x1xf32> to vector<16x32xf32>
    %86 = arith.subf %80, %85 : vector<16x32xf32>
    %87 = arith.mulf %86, %86 : vector<16x32xf32>
    %cst_24 = arith.constant dense<0.000000e+00> : vector<16xf32>
    %88 = vector.multi_reduction <add>, %87, %cst_24 [1] : vector<16x32xf32> to vector<16xf32>
    %89 = vector.shape_cast %88 : vector<16xf32> to vector<16x1xf32>
    %cst_25 = arith.constant 3.200000e+01 : f32
    %90 = vector.broadcast %cst_25 : f32 to vector<16x1xf32>
    %91 = arith.divf %89, %90 : vector<16x1xf32>
    %92 = vector.broadcast %84 : vector<16x1xf32> to vector<16x32xf32>
    %93 = arith.subf %80, %92 : vector<16x32xf32>
    %cst_26 = arith.constant 9.99999974E-6 : f32
    %94 = vector.broadcast %cst_26 : f32 to vector<16x1xf32>
    %95 = arith.addf %91, %94 : vector<16x1xf32>
    %96 = math.rsqrt %95 : vector<16x1xf32>
    %97 = vector.broadcast %96 : vector<16x1xf32> to vector<16x32xf32>
    %98 = arith.mulf %93, %97 : vector<16x32xf32>
    %99 = vector.extract_strided_slice %1 {offsets = [4, 0], sizes = [1, 32], strides = [1, 1]} : vector<8x192xf32> to vector<1x32xf32>
    %100 = vector.broadcast %99 : vector<1x32xf32> to vector<16x32xf32>
    %101 = arith.mulf %98, %100 : vector<16x32xf32>
    %102 = vector.extract_strided_slice %1 {offsets = [5, 0], sizes = [1, 32], strides = [1, 1]} : vector<8x192xf32> to vector<1x32xf32>
    %103 = vector.broadcast %102 : vector<1x32xf32> to vector<16x32xf32>
    %104 = arith.addf %101, %103 : vector<16x32xf32>
    %c32 = arith.constant 32 : index
    %c0_27 = arith.constant 0 : index
    %105 = vector.load %arg1[%c32, %c0_27] : memref<152x192xf32, #tpu.memory_space<vmem>>, vector<32x96xf32>
    %cst_28 = arith.constant dense<0.000000e+00> : vector<16x96xf32>
    %106 = tpu.matmul %104, %105, %cst_28 {dimension_numbers = #tpu.dot_dimension_numbers<[1], [0], [0], [1], [0, 0, 1, 1], [], []>} : vector<16x32xf32>, vector<32x96xf32>, vector<16x96xf32> -> vector<16x96xf32>
    %107 = vector.extract_strided_slice %1 {offsets = [2, 0], sizes = [1, 96], strides = [1, 1]} : vector<8x192xf32> to vector<1x96xf32>
    %108 = vector.broadcast %107 : vector<1x96xf32> to vector<16x96xf32>
    %109 = arith.addf %106, %108 : vector<16x96xf32>
    %110 = vector.extract_strided_slice %109 {offsets = [0, 0], sizes = [16, 64], strides = [1, 1]} : vector<16x96xf32> to vector<16x64xf32>
    %cst_29 = arith.constant 0.000000e+00 : f32
    %111 = vector.broadcast %cst_29 : f32 to vector<16x64xf32>
    %112 = arith.maximumf %110, %111 : vector<16x64xf32>
    %113 = vector.extract_strided_slice %109 {offsets = [0, 64], sizes = [16, 32], strides = [1, 1]} : vector<16x96xf32> to vector<16x32xf32>
    %114 = arith.negf %113 : vector<16x32xf32>
    %115 = math.exp %114 : vector<16x32xf32>
    %cst_30 = arith.constant 1.000000e+00 : f32
    %116 = vector.broadcast %cst_30 : f32 to vector<16x32xf32>
    %117 = arith.addf %116, %115 : vector<16x32xf32>
    %118 = arith.divf %116, %117 : vector<16x32xf32>
    %c64 = arith.constant 64 : index
    %c0_31 = arith.constant 0 : index
    %119 = vector.load %arg1[%c64, %c0_31] : memref<152x192xf32, #tpu.memory_space<vmem>>, vector<64x32xf32>
    %cst_32 = arith.constant dense<0.000000e+00> : vector<16x32xf32>
    %120 = tpu.matmul %112, %119, %cst_32 {dimension_numbers = #tpu.dot_dimension_numbers<[1], [0], [0], [1], [0, 0, 1, 1], [], []>} : vector<16x64xf32>, vector<64x32xf32>, vector<16x32xf32> -> vector<16x32xf32>
    %121 = vector.extract_strided_slice %1 {offsets = [3, 0], sizes = [1, 32], strides = [1, 1]} : vector<8x192xf32> to vector<1x32xf32>
    %122 = vector.broadcast %121 : vector<1x32xf32> to vector<16x32xf32>
    %123 = arith.addf %120, %122 : vector<16x32xf32>
    %124 = arith.mulf %123, %118 : vector<16x32xf32>
    %125 = arith.addf %104, %124 : vector<16x32xf32>
    %cst_33 = arith.constant dense<0.000000e+00> : vector<16xf32>
    %126 = vector.multi_reduction <add>, %125, %cst_33 [1] : vector<16x32xf32> to vector<16xf32>
    %127 = vector.shape_cast %126 : vector<16xf32> to vector<16x1xf32>
    %cst_34 = arith.constant 3.200000e+01 : f32
    %128 = vector.broadcast %cst_34 : f32 to vector<16x1xf32>
    %129 = arith.divf %127, %128 : vector<16x1xf32>
    %130 = vector.broadcast %129 : vector<16x1xf32> to vector<16x32xf32>
    %131 = arith.subf %125, %130 : vector<16x32xf32>
    %132 = arith.mulf %131, %131 : vector<16x32xf32>
    %cst_35 = arith.constant dense<0.000000e+00> : vector<16xf32>
    %133 = vector.multi_reduction <add>, %132, %cst_35 [1] : vector<16x32xf32> to vector<16xf32>
    %134 = vector.shape_cast %133 : vector<16xf32> to vector<16x1xf32>
    %cst_36 = arith.constant 3.200000e+01 : f32
    %135 = vector.broadcast %cst_36 : f32 to vector<16x1xf32>
    %136 = arith.divf %134, %135 : vector<16x1xf32>
    %137 = vector.broadcast %129 : vector<16x1xf32> to vector<16x32xf32>
    %138 = arith.subf %125, %137 : vector<16x32xf32>
    %cst_37 = arith.constant 9.99999974E-6 : f32
    %139 = vector.broadcast %cst_37 : f32 to vector<16x1xf32>
    %140 = arith.addf %136, %139 : vector<16x1xf32>
    %141 = math.rsqrt %140 : vector<16x1xf32>
    %142 = vector.broadcast %141 : vector<16x1xf32> to vector<16x32xf32>
    %143 = arith.mulf %138, %142 : vector<16x32xf32>
    %144 = vector.extract_strided_slice %1 {offsets = [6, 0], sizes = [1, 32], strides = [1, 1]} : vector<8x192xf32> to vector<1x32xf32>
    %145 = vector.broadcast %144 : vector<1x32xf32> to vector<16x32xf32>
    %146 = arith.mulf %143, %145 : vector<16x32xf32>
    %147 = vector.extract_strided_slice %1 {offsets = [7, 0], sizes = [1, 32], strides = [1, 1]} : vector<8x192xf32> to vector<1x32xf32>
    %148 = vector.broadcast %147 : vector<1x32xf32> to vector<16x32xf32>
    %149 = arith.addf %146, %148 : vector<16x32xf32>
    %c0_38 = arith.constant 0 : index
    %c0_39 = arith.constant 0 : index
    %150 = vector.load %arg2[%c0_38, %c0_39] : memref<16x32xf32, #tpu.memory_space<vmem>>, vector<16x32xf32>
    tpu.vector_store %arg2[%c0_38, %c0_39], %149 {strides = array<i32>} : memref<16x32xf32, #tpu.memory_space<vmem>>, vector<16x32xf32>,
    return
  }
}

</mosaic_0001>

<llo_original>
// kernel: tpu_custom_call.1
$region0: #{tpu_custom_call.1}
  #allocation0 [shape = 'u32[]', space=smem, size = 0x4, offset = 0x4, fixed_abs, tag = 'smem constant byte address 0x4 - core index']
  #allocation1 [shape = 'u32[144,128]{1,0:T(1,128)}', space=vmem, size = 0x12000, scoped, tag = 'internal scratch']
  %s0 = inlined_call_operand.hbm [shape: f32[16,32], index: 0, kind: input, shape index: {}]
  %s1 = inlined_call_operand.hbm [shape: f32[152,192], index: 1, kind: input, shape index: {}]
  %s2 = inlined_call_operand.hbm [shape: f32[16,32], index: 2, kind: output, shape index: {}]
  %s3 = sld [smem:[#allocation0]]
  $region26: #{tpu_custom_call.1} parent=0
    _
  %s5 = ssub.s32 1, %s3
  %s6 = scalar_select 0, %s5, %s3
  $region1: #{tpu_custom_call.1} parent=0
    #allocation2 [shape = 'u8[8192]{0}', space=vmem, size = 0x2000, scoped, tag = 'input window, operand 0, single buffered']
    #allocation3 [shape = 's32[1]{0}', space=sflag, size = 0x4, scoped, tag = 'scoped memory for tpu_custom_call.1']
    #allocation4 [shape = 's32[1]{0}', space=sflag, size = 0x4, scoped, tag = 'scoped memory for tpu_custom_call.1']
    #allocation5 [shape = 'u8[155648]{0}', space=vmem, size = 0x26000, scoped, tag = 'input window, operand 1, single buffered']
    #allocation6 [shape = 's32[1]{0}', space=sflag, size = 0x4, scoped, tag = 'scoped memory for tpu_custom_call.1']
    #allocation7 [shape = 'u8[8192]{0}', space=vmem, size = 0x2000, scoped, tag = 'output window, operand 0, single buffered']
    %7 = vsyncpa [#allocation3], 0
    %8 = vsyncpa [#allocation6], 0
    %9 = vsyncpa [#allocation4], 0
    // Predicated region
    $region2: #{tpu_custom_call.1} parent=1 // pred_check
      _
    $region3: #{tpu_custom_call.1} parent=1 // pred_check_branch
      %11 = sbr.rel (0) target = $region5
    $region4: #{tpu_custom_call.1} parent=1 // pred_region
      %s13 = ssub.s32 256, 256
      %14 = vsyncadd [#allocation3], %s13
      %s15 = sshll.u32 [#allocation2], 4
      %s16 = int_to_ptr.vmem [resolvable:$true] %s15
      %21 = dma.hbm_to_vmem [thread:$0]  %s0, 256, %s16, [#allocation3], 128, 128, 8
    $region5: #{tpu_custom_call.1} parent=1 // pred_fallthru
      _
    // Predicated region
    $region6: #{tpu_custom_call.1} parent=1 // pred_check
      _
    $region7: #{tpu_custom_call.1} parent=1 // pred_check_branch
      %23 = sbr.rel (0) target = $region9
    $region8: #{tpu_custom_call.1} parent=1 // pred_region
      %s25 = ssub.s32 4864, 4864
      %26 = vsyncadd [#allocation6], %s25
      %s27 = sshll.u32 [#allocation5], 4
      %s28 = int_to_ptr.vmem [resolvable:$true] %s27
      %33 = dma.hbm_to_vmem [thread:$0]  %s1, 4864, %s28, [#allocation6], 256, 256, 16
    $region9: #{tpu_custom_call.1} parent=1 // pred_fallthru
      _
    // Predicated region
    $region10: #{tpu_custom_call.1} parent=1 // pred_check
      _
    $region11: #{tpu_custom_call.1} parent=1 // pred_check_branch
      %35 = sbr.rel (0) target = $region13
    $region12: #{tpu_custom_call.1} parent=1 // pred_region
      %36 = dma.done [#allocation3], 256
    $region13: #{tpu_custom_call.1} parent=1 // pred_fallthru
      _
    // Predicated region
    $region14: #{tpu_custom_call.1} parent=1 // pred_check
      _
    $region15: #{tpu_custom_call.1} parent=1 // pred_check_branch
      %38 = sbr.rel (0) target = $region17
    $region16: #{tpu_custom_call.1} parent=1 // pred_region
      %39 = dma.done [#allocation6], 4864
    $region17: #{tpu_custom_call.1} parent=1 // pred_fallthru
      _
    %v40 = vld [vmem:[#allocation2] sm:$0xff]
    %v41 = vld [vmem:[#allocation2 + $0x8] sm:$0xff]
    %v42 = vld [vmem:[#allocation5 + $0x120] sm:$0xff]
    %v43 = vld [vmem:[#allocation5 + $0x128] sm:$0xff]
    %v44 = vld [vmem:[#allocation5] sm:$0xff]
    %v45 = vld [vmem:[#allocation5 + $0x8] sm:$0xff]
    %v46 = vld [vmem:[#allocation5 + $0x10] sm:$0xff]
    %v47 = vld [vmem:[#allocation5 + $0x18] sm:$0xff]
    %v48 = vld [vmem:[#allocation5 + $0x20] sm:$0xff]
    %v49 = vld [vmem:[#allocation5 + $0x28] sm:$0xff]
    %v50 = vld [vmem:[#allocation5 + $0x30] sm:$0xff]
    %v51 = vld [vmem:[#allocation5 + $0x38] sm:$0xff]
    %v52 = vlaneseq
    %v53 = vshrl.u32 %v52, 7
    %v54 = vsub.s32 0, %v53
    %v55 = vrot.slane %v42, %v54
    %v56 = vlaneseq
    %v57 = vshrl.u32 %v56, 7
    %v58 = vsub.s32 0, %v57
    %v59 = vrot.slane %v43, %v58
    %vm60 = vcmask 261120
    %v62 = vsel %vm60, %v40, 0
    %v65 = vsel %vm60, %v41, 0
    %67 = vmatprep.subr.mxu0 %v45
    %68 = vmatpush1.msra.mxu0 %v44
    %69 = vmatprep.subr.mxu0 %v47
    %70 = vmatpush1.msra.mxu0 %v46
    %71 = vmatprep.subr.mxu0 %v49
    %72 = vmatpush1.msra.mxu0 %v48
    %73 = vmatprep.subr.mxu0 %v51
    %74 = vmatpush1.msra.mxu0 %v50
    %75 = vmatprep.subr.mxu0 0.0
    %76 = vmatpush1.msra.mxu0 0.0
    %77 = vmatprep.subr.mxu0 0.0
    %78 = vmatpush1.msra.mxu0 0.0
    %79 = vmatprep.subr.mxu0 0.0
    %80 = vmatpush1.msra.mxu0 0.0
    %81 = vmatprep.subr.mxu0 0.0
    %82 = vmatpush1.msra.mxu0 0.0
    %83 = vmatprep.subr.mxu0 0.0
    %84 = vmatpush1.msra.mxu0 0.0
    %85 = vmatprep.subr.mxu0 0.0
    %86 = vmatpush1.msra.mxu0 0.0
    %87 = vmatprep.subr.mxu0 0.0
    %88 = vmatpush1.msra.mxu0 0.0
    %89 = vmatprep.subr.mxu0 0.0
    %90 = vmatpush1.msra.mxu0 0.0
    %91 = vmatprep.subr.mxu0 0.0
    %92 = vmatpush1.msra.mxu0 0.0
    %93 = vmatprep.subr.mxu0 0.0
    %94 = vmatpush1.msra.mxu0 0.0
    %95 = vmatprep.subr.mxu0 0.0
    %96 = vmatpush1.msra.mxu0 0.0
    %97 = vmatprep.subr.mxu0 0.0
    %98 = vmatpush1.msra.mxu0 0.0
    %99 = vmatprep.subr.mxu0 0.0
    %100 = vmatpush1.msra.mxu0 0.0
    %101 = vmatprep.subr.mxu0 0.0
    %102 = vmatpush1.msra.mxu0 0.0
    %103 = vmatprep.subr.mxu0 0.0
    %104 = vmatpush1.msra.mxu0 0.0
    %105 = vmatprep.subr.mxu0 0.0
    %106 = vmatpush1.msra.mxu0 0.0
    %107 = vmatprep.subr.mxu0 0.0
    %108 = vmatpush1.msra.mxu0 0.0
    %109 = vmatprep.subr.mxu0 0.0
    %110 = vmatpush1.msra.mxu0 0.0
    %111 = vmatprep.subr.mxu0 0.0
    %112 = vmatpush1.msra.mxu0 0.0
    %113 = vmatprep.subr.mxu0 0.0
    %114 = vmatpush1.msra.mxu0 0.0
    %115 = vmatprep.subr.mxu0 0.0
    %116 = vmatpush1.msra.mxu0 0.0
    %117 = vmatprep.subr.mxu0 0.0
    %118 = vmatpush1.msra.mxu0 0.0
    %119 = vmatprep.subr.mxu0 0.0
    %120 = vmatpush1.msra.mxu0 0.0
    %121 = vmatprep.subr.mxu0 0.0
    %122 = vmatpush1.msra.mxu0 0.0
    %123 = vmatprep.subr.mxu0 0.0
    %124 = vmatpush1.msra.mxu0 0.0
    %125 = vmatprep.subr.mxu0 0.0
    %126 = vmatpush1.msra.mxu0 0.0
    %127 = vmatprep.subr.mxu0 0.0
    %128 = vmatpush1.msra.mxu0 0.0
    %129 = vmatprep.subr.mxu0 0.0
    %130 = vmatpush1.msra.mxu0 0.0
    %131 = vmatprep.mubr.f32.mxu0 0.0
    %132 = vmatmul.mubr.f32.gmra.mrb[0].mxu0 %v62
    %v133 = vpop.f32.mrb[0].mxu0
    %v134 = vadd.f32 %v55, %v133
    %v135 = vpop.f32.mrb[0].mxu0
    %v136 = vadd.f32 %v59, %v135
    %137 = vmatprep.mubr.f32.mxu0 0.0
    %138 = vmatmul.mubr.f32.gmra.mrb[0].mxu0 %v65
    %v139 = vpop.f32.mrb[0].mxu0
    %v140 = vadd.f32 %v55, %v139
    %v141 = vpop.f32.mrb[0].mxu0
    %v142 = vadd.f32 %v59, %v141
    %143 = vdwg.mxu0
    %v144 = vld [vmem:[#allocation5 + $0x100] sm:$0xff]
    %v145 = vld [vmem:[#allocation5 + $0x110] sm:$0xff]
    %148 = vrot.lane.b32.xlu0 %v134, 96
    %v149 = vpop.permute.xlu0 %148
    %150 = vrot.lane.b32.xlu0 %v140, 96
    %v151 = vpop.permute.xlu0 %150
    %vm152 = vcmask 64512
    %v153 = vsel %vm152, %v134, 0
    %v155 = vsel %vm152, %v140, 0
    %v157 = vsel %vm152, %v149, 0
    %v159 = vsel %vm152, %v151, 0
    %161 = vmatprep.subr.mxu0 0.0
    %162 = vmatpush1.xpose.msra.mxu0 %v157
    %163 = vmatprep.subr.mxu0 0.0
    %164 = vmatpush1.xpose.msra.mxu0 %v159
    %165 = vmatprep.subr.mxu0 0.0
    %166 = vmatpush1.xpose.msra.mxu0 0.0
    %167 = vmatprep.subr.mxu0 0.0
    %168 = vmatpush1.xpose.msra.mxu0 0.0
    %169 = vmatprep.subr.mxu0 0.0
    %170 = vmatpush1.xpose.msra.mxu0 0.0
    %171 = vmatprep.subr.mxu0 0.0
    %172 = vmatpush1.xpose.msra.mxu0 0.0
    %173 = vmatprep.subr.mxu0 0.0
    %174 = vmatpush1.xpose.msra.mxu0 0.0
    %175 = vmatprep.subr.mxu0 0.0
    %176 = vmatpush1.xpose.msra.mxu0 0.0
    %177 = vmatprep.subr.mxu0 0.0
    %178 = vmatpush1.xpose.msra.mxu0 0.0
    %179 = vmatprep.subr.mxu0 0.0
    %180 = vmatpush1.xpose.msra.mxu0 0.0
    %181 = vmatprep.subr.mxu0 0.0
    %182 = vmatpush1.xpose.msra.mxu0 0.0
    %183 = vmatprep.subr.mxu0 0.0
    %184 = vmatpush1.xpose.msra.mxu0 0.0
    %185 = vmatprep.subr.mxu0 0.0
    %186 = vmatpush1.xpose.msra.mxu0 0.0
    %187 = vmatprep.subr.mxu0 0.0
    %188 = vmatpush1.xpose.msra.mxu0 0.0
    %189 = vmatprep.subr.mxu0 0.0
    %190 = vmatpush1.xpose.msra.mxu0 0.0
    %191 = vmatprep.subr.mxu0 0.0
    %192 = vmatpush1.xpose.msra.mxu0 0.0
    %193 = vmatprep.subr.mxu0 0.0
    %194 = vmatpush1.xpose.msra.mxu0 0.0
    %195 = vmatprep.subr.mxu0 0.0
    %196 = vmatpush1.xpose.msra.mxu0 0.0
    %197 = vmatprep.subr.mxu0 0.0
    %198 = vmatpush1.xpose.msra.mxu0 0.0
    %199 = vmatprep.subr.mxu0 0.0
    %200 = vmatpush1.xpose.msra.mxu0 0.0
    %201 = vmatprep.subr.mxu0 0.0
    %202 = vmatpush1.xpose.msra.mxu0 0.0
    %203 = vmatprep.subr.mxu0 0.0
    %204 = vmatpush1.xpose.msra.mxu0 0.0
    %205 = vmatprep.subr.mxu0 0.0
    %206 = vmatpush1.xpose.msra.mxu0 0.0
    %207 = vmatprep.subr.mxu0 0.0
    %208 = vmatpush1.xpose.msra.mxu0 0.0
    %209 = vmatprep.subr.mxu0 0.0
    %210 = vmatpush1.xpose.msra.mxu0 0.0
    %211 = vmatprep.subr.mxu0 0.0
    %212 = vmatpush1.xpose.msra.mxu0 0.0
    %213 = vmatprep.subr.mxu0 0.0
    %214 = vmatpush1.xpose.msra.mxu0 0.0
    %215 = vmatprep.subr.mxu0 0.0
    %216 = vmatpush1.xpose.msra.mxu0 0.0
    %217 = vmatprep.subr.mxu0 0.0
    %218 = vmatpush1.xpose.msra.mxu0 0.0
    %219 = vmatprep.subr.mxu0 0.0
    %220 = vmatpush1.xpose.msra.mxu0 0.0
    %221 = vmatprep.subr.mxu0 0.0
    %222 = vmatpush1.xpose.msra.mxu0 0.0
    %223 = vmatprep.subr.mxu0 0.0
    %224 = vmatpush1.xpose.msra.mxu0 0.0
    %225 = vmatprep.mubr.f32.mxu0 0.0
    %226 = vmatmul.mubr.f32.gmra.mrb[0].mxu0 %v153
    %v227 = vpop.f32.mrb[0].mxu0
    %v228 = vadd.f32 %v144, %v227
    %v229 = vpop.f32.mrb[0].mxu0
    %230 = vmatprep.mubr.f32.mxu0 0.0
    %231 = vmatmul.mubr.f32.gmra.mrb[0].mxu0 %v155
    %v232 = vpop.f32.mrb[0].mxu0
    %v233 = vadd.f32 %v145, %v232
    %v234 = vpop.f32.mrb[0].mxu0
    %235 = vdwg.mxu0
    %vm236 = vcmask 130048
    %v237 = vsel %vm236, %v228, -inf
    %238 = vmax.xlane.f32.xlu0 %v237
    %v239 = vpop.xlane.xlu0 %238
    %v240 = vsel %vm236, %v233, -inf
    %241 = vmax.xlane.f32.xlu0 %v240
    %v242 = vpop.xlane.xlu0 %241
    %v243 = vsub.f32 %v228, %v239
    %v244 = vsub.f32 %v233, %v242
    %v245 = vmul.f32 %v243, 1.442695
    %v246 = vpow.pop %v245
    %v247 = vmul.f32 %v244, 1.442695
    %v248 = vpow.pop %v247
    %v249 = vsel %vm236, %v246, 0.0
    %250 = vadd.xlane.f32.xlu0 %v249
    %v251 = vpop.xlane.xlu0 %250
    %v252 = vsel %vm236, %v248, 0.0
    %253 = vadd.xlane.f32.xlu0 %v252
    %v254 = vpop.xlane.xlu0 %253
    %v255 = vrcp.pop %v251
    %v256 = vrcp.pop %v254
    %v257 = vmul.f32 %v246, %v255
    %v258 = vmul.f32 %v248, %v256
    %259 = vrot.lane.b32.xlu0 %v134, 120
    %v260 = vpop.permute.xlu0 %259
    %261 = vrot.lane.b32.xlu0 %v140, 120
    %v262 = vpop.permute.xlu0 %261
    %263 = vrot.lane.b32.xlu0 %v134, 88
    %v264 = vpop.permute.xlu0 %263
    %265 = vrot.lane.b32.xlu0 %v140, 88
    %v266 = vpop.permute.xlu0 %265
    %v267 = vsel %vm152, %v260, 0
    %v269 = vsel %vm152, %v262, 0
    %v271 = vsel %vm152, %v264, 0
    %v273 = vsel %vm152, %v266, 0
    %275 = vmatprep.subr.mxu0 0.0
    %276 = vmatpush1.xpose.msra.mxu0 %v271
    %277 = vmatprep.subr.mxu0 0.0
    %278 = vmatpush1.xpose.msra.mxu0 %v273
    %279 = vmatprep.subr.mxu0 0.0
    %280 = vmatpush1.xpose.msra.mxu0 0.0
    %281 = vmatprep.subr.mxu0 0.0
    %282 = vmatpush1.xpose.msra.mxu0 0.0
    %283 = vmatprep.subr.mxu0 0.0
    %284 = vmatpush1.xpose.msra.mxu0 0.0
    %285 = vmatprep.subr.mxu0 0.0
    %286 = vmatpush1.xpose.msra.mxu0 0.0
    %287 = vmatprep.subr.mxu0 0.0
    %288 = vmatpush1.xpose.msra.mxu0 0.0
    %289 = vmatprep.subr.mxu0 0.0
    %290 = vmatpush1.xpose.msra.mxu0 0.0
    %291 = vmatprep.subr.mxu0 0.0
    %292 = vmatpush1.xpose.msra.mxu0 0.0
    %293 = vmatprep.subr.mxu0 0.0
    %294 = vmatpush1.xpose.msra.mxu0 0.0
    %295 = vmatprep.subr.mxu0 0.0
    %296 = vmatpush1.xpose.msra.mxu0 0.0
    %297 = vmatprep.subr.mxu0 0.0
    %298 = vmatpush1.xpose.msra.mxu0 0.0
    %299 = vmatprep.subr.mxu0 0.0
    %300 = vmatpush1.xpose.msra.mxu0 0.0
    %301 = vmatprep.subr.mxu0 0.0
    %302 = vmatpush1.xpose.msra.mxu0 0.0
    %303 = vmatprep.subr.mxu0 0.0
    %304 = vmatpush1.xpose.msra.mxu0 0.0
    %305 = vmatprep.subr.mxu0 0.0
    %306 = vmatpush1.xpose.msra.mxu0 0.0
    %307 = vmatprep.subr.mxu0 0.0
    %308 = vmatpush1.xpose.msra.mxu0 0.0
    %309 = vmatprep.subr.mxu0 0.0
    %310 = vmatpush1.xpose.msra.mxu0 0.0
    %311 = vmatprep.subr.mxu0 0.0
    %312 = vmatpush1.xpose.msra.mxu0 0.0
    %313 = vmatprep.subr.mxu0 0.0
    %314 = vmatpush1.xpose.msra.mxu0 0.0
    %315 = vmatprep.subr.mxu0 0.0
    %316 = vmatpush1.xpose.msra.mxu0 0.0
    %317 = vmatprep.subr.mxu0 0.0
    %318 = vmatpush1.xpose.msra.mxu0 0.0
    %319 = vmatprep.subr.mxu0 0.0
    %320 = vmatpush1.xpose.msra.mxu0 0.0
    %321 = vmatprep.subr.mxu0 0.0
    %322 = vmatpush1.xpose.msra.mxu0 0.0
    %323 = vmatprep.subr.mxu0 0.0
    %324 = vmatpush1.xpose.msra.mxu0 0.0
    %325 = vmatprep.subr.mxu0 0.0
    %326 = vmatpush1.xpose.msra.mxu0 0.0
    %327 = vmatprep.subr.mxu0 0.0
    %328 = vmatpush1.xpose.msra.mxu0 0.0
    %329 = vmatprep.subr.mxu0 0.0
    %330 = vmatpush1.xpose.msra.mxu0 0.0
    %331 = vmatprep.subr.mxu0 0.0
    %332 = vmatpush1.xpose.msra.mxu0 0.0
    %333 = vmatprep.subr.mxu0 0.0
    %334 = vmatpush1.xpose.msra.mxu0 0.0
    %335 = vmatprep.subr.mxu0 0.0
    %336 = vmatpush1.xpose.msra.mxu0 0.0
    %337 = vmatprep.subr.mxu0 0.0
    %338 = vmatpush1.xpose.msra.mxu0 0.0
    %339 = vmatprep.mubr.f32.mxu0 0.0
    %340 = vmatmul.mubr.f32.gmra.mrb[0].mxu0 %v267
    %v341 = vpop.f32.mrb[0].mxu0
    %v342 = vadd.f32 %v144, %v341
    %v343 = vpop.f32.mrb[0].mxu0
    %344 = vmatprep.mubr.f32.mxu0 0.0
    %345 = vmatmul.mubr.f32.gmra.mrb[0].mxu0 %v269
    %v346 = vpop.f32.mrb[0].mxu0
    %v347 = vadd.f32 %v145, %v346
    %v348 = vpop.f32.mrb[0].mxu0
    %349 = vdwg.mxu0
    %v350 = vsel %vm236, %v342, -inf
    %351 = vmax.xlane.f32.xlu0 %v350
    %v352 = vpop.xlane.xlu0 %351
    %v353 = vsel %vm236, %v347, -inf
    %354 = vmax.xlane.f32.xlu0 %v353
    %v355 = vpop.xlane.xlu0 %354
    %v356 = vsub.f32 %v342, %v352
    %v357 = vsub.f32 %v347, %v355
    %v358 = vmul.f32 %v356, 1.442695
    %v359 = vpow.pop %v358
    %v360 = vmul.f32 %v357, 1.442695
    %v361 = vpow.pop %v360
    %v362 = vsel %vm236, %v359, 0.0
    %363 = vadd.xlane.f32.xlu0 %v362
    %v364 = vpop.xlane.xlu0 %363
    %v365 = vsel %vm236, %v361, 0.0
    %366 = vadd.xlane.f32.xlu0 %v365
    %v367 = vpop.xlane.xlu0 %366
    %v368 = vrcp.pop %v364
    %v369 = vrcp.pop %v367
    %v370 = vmul.f32 %v359, %v368
    %v371 = vmul.f32 %v361, %v369
    %372 = vrot.lane.b32.xlu0 %v134, 32
    %v373 = vpop.permute.xlu0 %372
    %374 = vrot.lane.b32.xlu0 %v140, 32
    %v375 = vpop.permute.xlu0 %374
    %v379 = vsel %vm236, %v370, 0
    %v382 = vsel %vm236, %v371, 0
    %384 = vmatprep.subr.mxu0 0.0
    %385 = vmatpush1.msra.mxu0 %v373
    %386 = vmatprep.subr.mxu0 0.0
    %387 = vmatpush1.msra.mxu0 %v375
    %388 = vmatprep.subr.mxu0 0.0
    %389 = vmatpush1.msra.mxu0 0.0
    %390 = vmatprep.subr.mxu0 0.0
    %391 = vmatpush1.msra.mxu0 0.0
    %392 = vmatprep.subr.mxu0 0.0
    %393 = vmatpush1.msra.mxu0 0.0
    %394 = vmatprep.subr.mxu0 0.0
    %395 = vmatpush1.msra.mxu0 0.0
    %396 = vmatprep.subr.mxu0 0.0
    %397 = vmatpush1.msra.mxu0 0.0
    %398 = vmatprep.subr.mxu0 0.0
    %399 = vmatpush1.msra.mxu0 0.0
    %400 = vmatprep.subr.mxu0 0.0
    %401 = vmatpush1.msra.mxu0 0.0
    %402 = vmatprep.subr.mxu0 0.0
    %403 = vmatpush1.msra.mxu0 0.0
    %404 = vmatprep.subr.mxu0 0.0
    %405 = vmatpush1.msra.mxu0 0.0
    %406 = vmatprep.subr.mxu0 0.0
    %407 = vmatpush1.msra.mxu0 0.0
    %408 = vmatprep.subr.mxu0 0.0
    %409 = vmatpush1.msra.mxu0 0.0
    %410 = vmatprep.subr.mxu0 0.0
    %411 = vmatpush1.msra.mxu0 0.0
    %412 = vmatprep.subr.mxu0 0.0
    %413 = vmatpush1.msra.mxu0 0.0
    %414 = vmatprep.subr.mxu0 0.0
    %415 = vmatpush1.msra.mxu0 0.0
    %416 = vmatprep.subr.mxu0 0.0
    %417 = vmatpush1.msra.mxu0 0.0
    %418 = vmatprep.subr.mxu0 0.0
    %419 = vmatpush1.msra.mxu0 0.0
    %420 = vmatprep.subr.mxu0 0.0
    %421 = vmatpush1.msra.mxu0 0.0
    %422 = vmatprep.subr.mxu0 0.0
    %423 = vmatpush1.msra.mxu0 0.0
    %424 = vmatprep.subr.mxu0 0.0
    %425 = vmatpush1.msra.mxu0 0.0
    %426 = vmatprep.subr.mxu0 0.0
    %427 = vmatpush1.msra.mxu0 0.0
    %428 = vmatprep.subr.mxu0 0.0
    %429 = vmatpush1.msra.mxu0 0.0
    %430 = vmatprep.subr.mxu0 0.0
    %431 = vmatpush1.msra.mxu0 0.0
    %432 = vmatprep.subr.mxu0 0.0
    %433 = vmatpush1.msra.mxu0 0.0
    %434 = vmatprep.subr.mxu0 0.0
    %435 = vmatpush1.msra.mxu0 0.0
    %436 = vmatprep.subr.mxu0 0.0
    %437 = vmatpush1.msra.mxu0 0.0
    %438 = vmatprep.subr.mxu0 0.0
    %439 = vmatpush1.msra.mxu0 0.0
    %440 = vmatprep.subr.mxu0 0.0
    %441 = vmatpush1.msra.mxu0 0.0
    %442 = vmatprep.subr.mxu0 0.0
    %443 = vmatpush1.msra.mxu0 0.0
    %444 = vmatprep.subr.mxu0 0.0
    %445 = vmatpush1.msra.mxu0 0.0
    %446 = vmatprep.subr.mxu0 0.0
    %447 = vmatpush1.msra.mxu0 0.0
    %448 = vmatprep.mubr.f32.mxu0 0.0
    %449 = vmatmul.mubr.f32.gmra.mrb[0].mxu0 %v379
    %v450 = vpop.f32.mrb[0].mxu0
    %v451 = vadd.f32 0.0, %v450
    %v452 = vpop.f32.mrb[0].mxu0
    %453 = vmatprep.mubr.f32.mxu0 0.0
    %454 = vmatmul.mubr.f32.gmra.mrb[0].mxu0 %v382
    %v455 = vpop.f32.mrb[0].mxu0
    %v456 = vadd.f32 0.0, %v455
    %v457 = vpop.f32.mrb[0].mxu0
    %458 = vdwg.mxu0
    %459 = vrot.lane.b32.xlu0 %v134, 64
    %v460 = vpop.permute.xlu0 %459
    %461 = vrot.lane.b32.xlu0 %v140, 64
    %v462 = vpop.permute.xlu0 %461
    %v466 = vsel %vm236, %v257, 0
    %v469 = vsel %vm236, %v258, 0
    %471 = vmatprep.subr.mxu0 0.0
    %472 = vmatpush1.msra.mxu0 %v460
    %473 = vmatprep.subr.mxu0 0.0
    %474 = vmatpush1.msra.mxu0 %v462
    %475 = vmatprep.subr.mxu0 0.0
    %476 = vmatpush1.msra.mxu0 0.0
    %477 = vmatprep.subr.mxu0 0.0
    %478 = vmatpush1.msra.mxu0 0.0
    %479 = vmatprep.subr.mxu0 0.0
    %480 = vmatpush1.msra.mxu0 0.0
    %481 = vmatprep.subr.mxu0 0.0
    %482 = vmatpush1.msra.mxu0 0.0
    %483 = vmatprep.subr.mxu0 0.0
    %484 = vmatpush1.msra.mxu0 0.0
    %485 = vmatprep.subr.mxu0 0.0
    %486 = vmatpush1.msra.mxu0 0.0
    %487 = vmatprep.subr.mxu0 0.0
    %488 = vmatpush1.msra.mxu0 0.0
    %489 = vmatprep.subr.mxu0 0.0
    %490 = vmatpush1.msra.mxu0 0.0
    %491 = vmatprep.subr.mxu0 0.0
    %492 = vmatpush1.msra.mxu0 0.0
    %493 = vmatprep.subr.mxu0 0.0
    %494 = vmatpush1.msra.mxu0 0.0
    %495 = vmatprep.subr.mxu0 0.0
    %496 = vmatpush1.msra.mxu0 0.0
    %497 = vmatprep.subr.mxu0 0.0
    %498 = vmatpush1.msra.mxu0 0.0
    %499 = vmatprep.subr.mxu0 0.0
    %500 = vmatpush1.msra.mxu0 0.0
    %501 = vmatprep.subr.mxu0 0.0
    %502 = vmatpush1.msra.mxu0 0.0
    %503 = vmatprep.subr.mxu0 0.0
    %504 = vmatpush1.msra.mxu0 0.0
    %505 = vmatprep.subr.mxu0 0.0
    %506 = vmatpush1.msra.mxu0 0.0
    %507 = vmatprep.subr.mxu0 0.0
    %508 = vmatpush1.msra.mxu0 0.0
    %509 = vmatprep.subr.mxu0 0.0
    %510 = vmatpush1.msra.mxu0 0.0
    %511 = vmatprep.subr.mxu0 0.0
    %512 = vmatpush1.msra.mxu0 0.0
    %513 = vmatprep.subr.mxu0 0.0
    %514 = vmatpush1.msra.mxu0 0.0
    %515 = vmatprep.subr.mxu0 0.0
    %516 = vmatpush1.msra.mxu0 0.0
    %517 = vmatprep.subr.mxu0 0.0
    %518 = vmatpush1.msra.mxu0 0.0
    %519 = vmatprep.subr.mxu0 0.0
    %520 = vmatpush1.msra.mxu0 0.0
    %521 = vmatprep.subr.mxu0 0.0
    %522 = vmatpush1.msra.mxu0 0.0
    %523 = vmatprep.subr.mxu0 0.0
    %524 = vmatpush1.msra.mxu0 0.0
    %525 = vmatprep.subr.mxu0 0.0
    %526 = vmatpush1.msra.mxu0 0.0
    %527 = vmatprep.subr.mxu0 0.0
    %528 = vmatpush1.msra.mxu0 0.0
    %529 = vmatprep.subr.mxu0 0.0
    %530 = vmatpush1.msra.mxu0 0.0
    %531 = vmatprep.subr.mxu0 0.0
    %532 = vmatpush1.msra.mxu0 0.0
    %533 = vmatprep.subr.mxu0 0.0
    %534 = vmatpush1.msra.mxu0 0.0
    %535 = vmatprep.mubr.f32.mxu0 0.0
    %536 = vmatmul.mubr.f32.gmra.mrb[0].mxu0 %v466
    %v537 = vpop.f32.mrb[0].mxu0
    %v538 = vadd.f32 %v451, %v537
    %v539 = vpop.f32.mrb[0].mxu0
    %540 = vmatprep.mubr.f32.mxu0 0.0
    %541 = vmatmul.mubr.f32.gmra.mrb[0].mxu0 %v469
    %v542 = vpop.f32.mrb[0].mxu0
    %v543 = vadd.f32 %v456, %v542
    %v544 = vpop.f32.mrb[0].mxu0
    %545 = vdwg.mxu0
    %546 = vrot.lane.b32.xlu0 %v134, 112
    %v547 = vpop.permute.xlu0 %546
    %548 = vrot.lane.b32.xlu0 %v140, 112
    %v549 = vpop.permute.xlu0 %548
    %550 = vrot.lane.b32.xlu0 %v134, 80
    %v551 = vpop.permute.xlu0 %550
    %552 = vrot.lane.b32.xlu0 %v140, 80
    %v553 = vpop.permute.xlu0 %552
    %v554 = vsel %vm152, %v547, 0
    %v556 = vsel %vm152, %v549, 0
    %v558 = vsel %vm152, %v551, 0
    %v560 = vsel %vm152, %v553, 0
    %562 = vmatprep.subr.mxu0 0.0
    %563 = vmatpush1.xpose.msra.mxu0 %v558
    %564 = vmatprep.subr.mxu0 0.0
    %565 = vmatpush1.xpose.msra.mxu0 %v560
    %566 = vmatprep.subr.mxu0 0.0
    %567 = vmatpush1.xpose.msra.mxu0 0.0
    %568 = vmatprep.subr.mxu0 0.0
    %569 = vmatpush1.xpose.msra.mxu0 0.0
    %570 = vmatprep.subr.mxu0 0.0
    %571 = vmatpush1.xpose.msra.mxu0 0.0
    %572 = vmatprep.subr.mxu0 0.0
    %573 = vmatpush1.xpose.msra.mxu0 0.0
    %574 = vmatprep.subr.mxu0 0.0
    %575 = vmatpush1.xpose.msra.mxu0 0.0
    %576 = vmatprep.subr.mxu0 0.0
    %577 = vmatpush1.xpose.msra.mxu0 0.0
    %578 = vmatprep.subr.mxu0 0.0
    %579 = vmatpush1.xpose.msra.mxu0 0.0
    %580 = vmatprep.subr.mxu0 0.0
    %581 = vmatpush1.xpose.msra.mxu0 0.0
    %582 = vmatprep.subr.mxu0 0.0
    %583 = vmatpush1.xpose.msra.mxu0 0.0
    %584 = vmatprep.subr.mxu0 0.0
    %585 = vmatpush1.xpose.msra.mxu0 0.0
    %586 = vmatprep.subr.mxu0 0.0
    %587 = vmatpush1.xpose.msra.mxu0 0.0
    %588 = vmatprep.subr.mxu0 0.0
    %589 = vmatpush1.xpose.msra.mxu0 0.0
    %590 = vmatprep.subr.mxu0 0.0
    %591 = vmatpush1.xpose.msra.mxu0 0.0
    %592 = vmatprep.subr.mxu0 0.0
    %593 = vmatpush1.xpose.msra.mxu0 0.0
    %594 = vmatprep.subr.mxu0 0.0
    %595 = vmatpush1.xpose.msra.mxu0 0.0
    %596 = vmatprep.subr.mxu0 0.0
    %597 = vmatpush1.xpose.msra.mxu0 0.0
    %598 = vmatprep.subr.mxu0 0.0
    %599 = vmatpush1.xpose.msra.mxu0 0.0
    %600 = vmatprep.subr.mxu0 0.0
    %601 = vmatpush1.xpose.msra.mxu0 0.0
    %602 = vmatprep.subr.mxu0 0.0
    %603 = vmatpush1.xpose.msra.mxu0 0.0
    %604 = vmatprep.subr.mxu0 0.0
    %605 = vmatpush1.xpose.msra.mxu0 0.0
    %606 = vmatprep.subr.mxu0 0.0
    %607 = vmatpush1.xpose.msra.mxu0 0.0
    %608 = vmatprep.subr.mxu0 0.0
    %609 = vmatpush1.xpose.msra.mxu0 0.0
    %610 = vmatprep.subr.mxu0 0.0
    %611 = vmatpush1.xpose.msra.mxu0 0.0
    %612 = vmatprep.subr.mxu0 0.0
    %613 = vmatpush1.xpose.msra.mxu0 0.0
    %614 = vmatprep.subr.mxu0 0.0
    %615 = vmatpush1.xpose.msra.mxu0 0.0
    %616 = vmatprep.subr.mxu0 0.0
    %617 = vmatpush1.xpose.msra.mxu0 0.0
    %618 = vmatprep.subr.mxu0 0.0
    %619 = vmatpush1.xpose.msra.mxu0 0.0
    %620 = vmatprep.subr.mxu0 0.0
    %621 = vmatpush1.xpose.msra.mxu0 0.0
    %622 = vmatprep.subr.mxu0 0.0
    %623 = vmatpush1.xpose.msra.mxu0 0.0
    %624 = vmatprep.subr.mxu0 0.0
    %625 = vmatpush1.xpose.msra.mxu0 0.0
    %626 = vmatprep.mubr.f32.mxu0 0.0
    %627 = vmatmul.mubr.f32.gmra.mrb[0].mxu0 %v554
    %v628 = vpop.f32.mrb[0].mxu0
    %v629 = vadd.f32 %v144, %v628
    %v630 = vpop.f32.mrb[0].mxu0
    %631 = vmatprep.mubr.f32.mxu0 0.0
    %632 = vmatmul.mubr.f32.gmra.mrb[0].mxu0 %v556
    %v633 = vpop.f32.mrb[0].mxu0
    %v634 = vadd.f32 %v145, %v633
    %v635 = vpop.f32.mrb[0].mxu0
    %636 = vdwg.mxu0
    %v637 = vsel %vm236, %v629, -inf
    %638 = vmax.xlane.f32.xlu0 %v637
    %v639 = vpop.xlane.xlu0 %638
    %v640 = vsel %vm236, %v634, -inf
    %641 = vmax.xlane.f32.xlu0 %v640
    %v642 = vpop.xlane.xlu0 %641
    %v643 = vsub.f32 %v629, %v639
    %v644 = vsub.f32 %v634, %v642
    %v645 = vmul.f32 %v643, 1.442695
    %v646 = vpow.pop %v645
    %v647 = vmul.f32 %v644, 1.442695
    %v648 = vpow.pop %v647
    %v649 = vsel %vm236, %v646, 0.0
    %650 = vadd.xlane.f32.xlu0 %v649
    %v651 = vpop.xlane.xlu0 %650
    %v652 = vsel %vm236, %v648, 0.0
    %653 = vadd.xlane.f32.xlu0 %v652
    %v654 = vpop.xlane.xlu0 %653
    %v655 = vrcp.pop %v651
    %v656 = vrcp.pop %v654
    %v657 = vmul.f32 %v646, %v655
    %v658 = vmul.f32 %v648, %v656
    %v660 = vsel %vm236, %v657, 0
    %v663 = vsel %vm236, %v658, 0
    %665 = vmatprep.subr.mxu0 0.0
    %666 = vmatpush1.msra.mxu0 %v136
    %667 = vmatprep.subr.mxu0 0.0
    %668 = vmatpush1.msra.mxu0 %v142
    %669 = vmatprep.subr.mxu0 0.0
    %670 = vmatpush1.msra.mxu0 0.0
    %671 = vmatprep.subr.mxu0 0.0
    %672 = vmatpush1.msra.mxu0 0.0
    %673 = vmatprep.subr.mxu0 0.0
    %674 = vmatpush1.msra.mxu0 0.0
    %675 = vmatprep.subr.mxu0 0.0
    %676 = vmatpush1.msra.mxu0 0.0
    %677 = vmatprep.subr.mxu0 0.0
    %678 = vmatpush1.msra.mxu0 0.0
    %679 = vmatprep.subr.mxu0 0.0
    %680 = vmatpush1.msra.mxu0 0.0
    %681 = vmatprep.subr.mxu0 0.0
    %682 = vmatpush1.msra.mxu0 0.0
    %683 = vmatprep.subr.mxu0 0.0
    %684 = vmatpush1.msra.mxu0 0.0
    %685 = vmatprep.subr.mxu0 0.0
    %686 = vmatpush1.msra.mxu0 0.0
    %687 = vmatprep.subr.mxu0 0.0
    %688 = vmatpush1.msra.mxu0 0.0
    %689 = vmatprep.subr.mxu0 0.0
    %690 = vmatpush1.msra.mxu0 0.0
    %691 = vmatprep.subr.mxu0 0.0
    %692 = vmatpush1.msra.mxu0 0.0
    %693 = vmatprep.subr.mxu0 0.0
    %694 = vmatpush1.msra.mxu0 0.0
    %695 = vmatprep.subr.mxu0 0.0
    %696 = vmatpush1.msra.mxu0 0.0
    %697 = vmatprep.subr.mxu0 0.0
    %698 = vmatpush1.msra.mxu0 0.0
    %699 = vmatprep.subr.mxu0 0.0
    %700 = vmatpush1.msra.mxu0 0.0
    %701 = vmatprep.subr.mxu0 0.0
    %702 = vmatpush1.msra.mxu0 0.0
    %703 = vmatprep.subr.mxu0 0.0
    %704 = vmatpush1.msra.mxu0 0.0
    %705 = vmatprep.subr.mxu0 0.0
    %706 = vmatpush1.msra.mxu0 0.0
    %707 = vmatprep.subr.mxu0 0.0
    %708 = vmatpush1.msra.mxu0 0.0
    %709 = vmatprep.subr.mxu0 0.0
    %710 = vmatpush1.msra.mxu0 0.0
    %711 = vmatprep.subr.mxu0 0.0
    %712 = vmatpush1.msra.mxu0 0.0
    %713 = vmatprep.subr.mxu0 0.0
    %714 = vmatpush1.msra.mxu0 0.0
    %715 = vmatprep.subr.mxu0 0.0
    %716 = vmatpush1.msra.mxu0 0.0
    %717 = vmatprep.subr.mxu0 0.0
    %718 = vmatpush1.msra.mxu0 0.0
    %719 = vmatprep.subr.mxu0 0.0
    %720 = vmatpush1.msra.mxu0 0.0
    %721 = vmatprep.subr.mxu0 0.0
    %722 = vmatpush1.msra.mxu0 0.0
    %723 = vmatprep.subr.mxu0 0.0
    %724 = vmatpush1.msra.mxu0 0.0
    %725 = vmatprep.subr.mxu0 0.0
    %726 = vmatpush1.msra.mxu0 0.0
    %727 = vmatprep.subr.mxu0 0.0
    %728 = vmatpush1.msra.mxu0 0.0
    %729 = vmatprep.mubr.f32.mxu0 0.0
    %730 = vmatmul.mubr.f32.gmra.mrb[0].mxu0 %v660
    %v731 = vpop.f32.mrb[0].mxu0
    %v732 = vadd.f32 0.0, %v731
    %v733 = vpop.f32.mrb[0].mxu0
    %734 = vmatprep.mubr.f32.mxu0 0.0
    %735 = vmatmul.mubr.f32.gmra.mrb[0].mxu0 %v663
    %v736 = vpop.f32.mrb[0].mxu0
    %v737 = vadd.f32 0.0, %v736
    %v738 = vpop.f32.mrb[0].mxu0
    %739 = vdwg.mxu0
    %v740 = vadd.f32 %v538, %v732
    %v741 = vadd.f32 %v543, %v737
    %742 = vrot.lane.b32.xlu0 %v134, 104
    %v743 = vpop.permute.xlu0 %742
    %744 = vrot.lane.b32.xlu0 %v140, 104
    %v745 = vpop.permute.xlu0 %744
    %746 = vrot.lane.b32.xlu0 %v134, 72
    %v747 = vpop.permute.xlu0 %746
    %748 = vrot.lane.b32.xlu0 %v140, 72
    %v749 = vpop.permute.xlu0 %748
    %v750 = vsel %vm152, %v743, 0
    %v752 = vsel %vm152, %v745, 0
    %v754 = vsel %vm152, %v747, 0
    %v756 = vsel %vm152, %v749, 0
    %758 = vmatprep.subr.mxu0 0.0
    %759 = vmatpush1.xpose.msra.mxu0 %v754
    %760 = vmatprep.subr.mxu0 0.0
    %761 = vmatpush1.xpose.msra.mxu0 %v756
    %762 = vmatprep.subr.mxu0 0.0
    %763 = vmatpush1.xpose.msra.mxu0 0.0
    %764 = vmatprep.subr.mxu0 0.0
    %765 = vmatpush1.xpose.msra.mxu0 0.0
    %766 = vmatprep.subr.mxu0 0.0
    %767 = vmatpush1.xpose.msra.mxu0 0.0
    %768 = vmatprep.subr.mxu0 0.0
    %769 = vmatpush1.xpose.msra.mxu0 0.0
    %770 = vmatprep.subr.mxu0 0.0
    %771 = vmatpush1.xpose.msra.mxu0 0.0
    %772 = vmatprep.subr.mxu0 0.0
    %773 = vmatpush1.xpose.msra.mxu0 0.0
    %774 = vmatprep.subr.mxu0 0.0
    %775 = vmatpush1.xpose.msra.mxu0 0.0
    %776 = vmatprep.subr.mxu0 0.0
    %777 = vmatpush1.xpose.msra.mxu0 0.0
    %778 = vmatprep.subr.mxu0 0.0
    %779 = vmatpush1.xpose.msra.mxu0 0.0
    %780 = vmatprep.subr.mxu0 0.0
    %781 = vmatpush1.xpose.msra.mxu0 0.0
    %782 = vmatprep.subr.mxu0 0.0
    %783 = vmatpush1.xpose.msra.mxu0 0.0
    %784 = vmatprep.subr.mxu0 0.0
    %785 = vmatpush1.xpose.msra.mxu0 0.0
    %786 = vmatprep.subr.mxu0 0.0
    %787 = vmatpush1.xpose.msra.mxu0 0.0
    %788 = vmatprep.subr.mxu0 0.0
    %789 = vmatpush1.xpose.msra.mxu0 0.0
    %790 = vmatprep.subr.mxu0 0.0
    %791 = vmatpush1.xpose.msra.mxu0 0.0
    %792 = vmatprep.subr.mxu0 0.0
    %793 = vmatpush1.xpose.msra.mxu0 0.0
    %794 = vmatprep.subr.mxu0 0.0
    %795 = vmatpush1.xpose.msra.mxu0 0.0
    %796 = vmatprep.subr.mxu0 0.0
    %797 = vmatpush1.xpose.msra.mxu0 0.0
    %798 = vmatprep.subr.mxu0 0.0
    %799 = vmatpush1.xpose.msra.mxu0 0.0
    %800 = vmatprep.subr.mxu0 0.0
    %801 = vmatpush1.xpose.msra.mxu0 0.0
    %802 = vmatprep.subr.mxu0 0.0
    %803 = vmatpush1.xpose.msra.mxu0 0.0
    %804 = vmatprep.subr.mxu0 0.0
    %805 = vmatpush1.xpose.msra.mxu0 0.0
    %806 = vmatprep.subr.mxu0 0.0
    %807 = vmatpush1.xpose.msra.mxu0 0.0
    %808 = vmatprep.subr.mxu0 0.0
    %809 = vmatpush1.xpose.msra.mxu0 0.0
    %810 = vmatprep.subr.mxu0 0.0
    %811 = vmatpush1.xpose.msra.mxu0 0.0
    %812 = vmatprep.subr.mxu0 0.0
    %813 = vmatpush1.xpose.msra.mxu0 0.0
    %814 = vmatprep.subr.mxu0 0.0
    %815 = vmatpush1.xpose.msra.mxu0 0.0
    %816 = vmatprep.subr.mxu0 0.0
    %817 = vmatpush1.xpose.msra.mxu0 0.0
    %818 = vmatprep.subr.mxu0 0.0
    %819 = vmatpush1.xpose.msra.mxu0 0.0
    %820 = vmatprep.subr.mxu0 0.0
    %821 = vmatpush1.xpose.msra.mxu0 0.0
    %822 = vmatprep.mubr.f32.mxu0 0.0
    %823 = vmatmul.mubr.f32.gmra.mrb[0].mxu0 %v750
    %v824 = vpop.f32.mrb[0].mxu0
    %v825 = vadd.f32 %v144, %v824
    %v826 = vpop.f32.mrb[0].mxu0
    %827 = vmatprep.mubr.f32.mxu0 0.0
    %828 = vmatmul.mubr.f32.gmra.mrb[0].mxu0 %v752
    %v829 = vpop.f32.mrb[0].mxu0
    %v830 = vadd.f32 %v145, %v829
    %v831 = vpop.f32.mrb[0].mxu0
    %832 = vdwg.mxu0
    %v833 = vsel %vm236, %v825, -inf
    %834 = vmax.xlane.f32.xlu0 %v833
    %v835 = vpop.xlane.xlu0 %834
    %v836 = vsel %vm236, %v830, -inf
    %837 = vmax.xlane.f32.xlu0 %v836
    %v838 = vpop.xlane.xlu0 %837
    %v839 = vsub.f32 %v825, %v835
    %v840 = vsub.f32 %v830, %v838
    %v841 = vmul.f32 %v839, 1.442695
    %v842 = vpow.pop %v841
    %v843 = vmul.f32 %v840, 1.442695
    %v844 = vpow.pop %v843
    %v845 = vsel %vm236, %v842, 0.0
    %846 = vadd.xlane.f32.xlu0 %v845
    %v847 = vpop.xlane.xlu0 %846
    %v848 = vsel %vm236, %v844, 0.0
    %849 = vadd.xlane.f32.xlu0 %v848
    %v850 = vpop.xlane.xlu0 %849
    %v851 = vrcp.pop %v847
    %v852 = vrcp.pop %v850
    %v853 = vmul.f32 %v842, %v851
    %v854 = vmul.f32 %v844, %v852
    %857 = vrot.lane.b32.xlu0 %v136, 96
    %v858 = vpop.permute.xlu0 %857
    %859 = vrot.lane.b32.xlu0 %v142, 96
    %v860 = vpop.permute.xlu0 %859
    %v864 = vsel %vm236, %v853, 0
    %v867 = vsel %vm236, %v854, 0
    %869 = vmatprep.subr.mxu0 0.0
    %870 = vmatpush1.msra.mxu0 %v858
    %871 = vmatprep.subr.mxu0 0.0
    %872 = vmatpush1.msra.mxu0 %v860
    %873 = vmatprep.subr.mxu0 0.0
    %874 = vmatpush1.msra.mxu0 0.0
    %875 = vmatprep.subr.mxu0 0.0
    %876 = vmatpush1.msra.mxu0 0.0
    %877 = vmatprep.subr.mxu0 0.0
    %878 = vmatpush1.msra.mxu0 0.0
    %879 = vmatprep.subr.mxu0 0.0
    %880 = vmatpush1.msra.mxu0 0.0
    %881 = vmatprep.subr.mxu0 0.0
    %882 = vmatpush1.msra.mxu0 0.0
    %883 = vmatprep.subr.mxu0 0.0
    %884 = vmatpush1.msra.mxu0 0.0
    %885 = vmatprep.subr.mxu0 0.0
    %886 = vmatpush1.msra.mxu0 0.0
    %887 = vmatprep.subr.mxu0 0.0
    %888 = vmatpush1.msra.mxu0 0.0
    %889 = vmatprep.subr.mxu0 0.0
    %890 = vmatpush1.msra.mxu0 0.0
    %891 = vmatprep.subr.mxu0 0.0
    %892 = vmatpush1.msra.mxu0 0.0
    %893 = vmatprep.subr.mxu0 0.0
    %894 = vmatpush1.msra.mxu0 0.0
    %895 = vmatprep.subr.mxu0 0.0
    %896 = vmatpush1.msra.mxu0 0.0
    %897 = vmatprep.subr.mxu0 0.0
    %898 = vmatpush1.msra.mxu0 0.0
    %899 = vmatprep.subr.mxu0 0.0
    %900 = vmatpush1.msra.mxu0 0.0
    %901 = vmatprep.subr.mxu0 0.0
    %902 = vmatpush1.msra.mxu0 0.0
    %903 = vmatprep.subr.mxu0 0.0
    %904 = vmatpush1.msra.mxu0 0.0
    %905 = vmatprep.subr.mxu0 0.0
    %906 = vmatpush1.msra.mxu0 0.0
    %907 = vmatprep.subr.mxu0 0.0
    %908 = vmatpush1.msra.mxu0 0.0
    %909 = vmatprep.subr.mxu0 0.0
    %910 = vmatpush1.msra.mxu0 0.0
    %911 = vmatprep.subr.mxu0 0.0
    %912 = vmatpush1.msra.mxu0 0.0
    %913 = vmatprep.subr.mxu0 0.0
    %914 = vmatpush1.msra.mxu0 0.0
    %915 = vmatprep.subr.mxu0 0.0
    %916 = vmatpush1.msra.mxu0 0.0
    %917 = vmatprep.subr.mxu0 0.0
    %918 = vmatpush1.msra.mxu0 0.0
    %919 = vmatprep.subr.mxu0 0.0
    %920 = vmatpush1.msra.mxu0 0.0
    %921 = vmatprep.subr.mxu0 0.0
    %922 = vmatpush1.msra.mxu0 0.0
    %923 = vmatprep.subr.mxu0 0.0
    %924 = vmatpush1.msra.mxu0 0.0
    %925 = vmatprep.subr.mxu0 0.0
    %926 = vmatpush1.msra.mxu0 0.0
    %927 = vmatprep.subr.mxu0 0.0
    %928 = vmatpush1.msra.mxu0 0.0
    %929 = vmatprep.subr.mxu0 0.0
    %930 = vmatpush1.msra.mxu0 0.0
    %931 = vmatprep.subr.mxu0 0.0
    %932 = vmatpush1.msra.mxu0 0.0
    %933 = vmatprep.mubr.f32.mxu0 0.0
    %934 = vmatmul.mubr.f32.gmra.mrb[0].mxu0 %v864
    %v935 = vpop.f32.mrb[0].mxu0
    %v936 = vadd.f32 0.0, %v935
    %v937 = vpop.f32.mrb[0].mxu0
    %938 = vmatprep.mubr.f32.mxu0 0.0
    %939 = vmatmul.mubr.f32.gmra.mrb[0].mxu0 %v867
    %v940 = vpop.f32.mrb[0].mxu0
    %v941 = vadd.f32 0.0, %v940
    %v942 = vpop.f32.mrb[0].mxu0
    %943 = vdwg.mxu0
    %v944 = vadd.f32 %v740, %v936
    %v945 = vadd.f32 %v741, %v941
    %v946 = vlaneseq
    %v947 = vshrl.u32 %v946, 7
    %v948 = vsub.s32 1, %v947
    %v949 = vrot.slane %v42, %v948
    %v950 = vadd.f32 %v944, %v949
    %v951 = vadd.f32 %v945, %v949
    %v952 = vadd.f32 %v40, %v950
    %v953 = vadd.f32 %v41, %v951
    %v954 = vsel %vm60, %v952, 0.0
    %955 = vadd.xlane.f32.xlu0 %v954
    %v956 = vpop.xlane.xlu0 %955
    %v957 = vsel %vm60, %v953, 0.0
    %958 = vadd.xlane.f32.xlu0 %v957
    %v959 = vpop.xlane.xlu0 %958
    %v960 = vrcp.pop 32.0
    %v961 = vmul.f32 %v956, %v960
    %v962 = vmul.f32 %v959, %v960
    %v963 = vsub.f32 %v952, %v961
    %v964 = vsub.f32 %v953, %v962
    %v965 = vmul.f32 %v963, %v963
    %v966 = vmul.f32 %v964, %v964
    %v967 = vsel %vm60, %v965, 0.0
    %968 = vadd.xlane.f32.xlu0 %v967
    %v969 = vpop.xlane.xlu0 %968
    %v970 = vsel %vm60, %v966, 0.0
    %971 = vadd.xlane.f32.xlu0 %v970
    %v972 = vpop.xlane.xlu0 %971
    %v973 = vmul.f32 %v969, %v960
    %v974 = vmul.f32 %v972, %v960
    %v975 = vadd.f32 %v973, 1e-05
    %v976 = vadd.f32 %v974, 1e-05
    %v977 = vrsqrt.pop %v975
    %v978 = vrsqrt.pop %v976
    %v979 = vmul.f32 %v963, %v977
    %v980 = vmul.f32 %v964, %v978
    %v981 = vlaneseq
    %v982 = vshrl.u32 %v981, 7
    %v983 = vsub.s32 4, %v982
    %v984 = vrot.slane %v42, %v983
    %v985 = vmul.f32 %v979, %v984
    %v986 = vmul.f32 %v980, %v984
    %v987 = vlaneseq
    %v988 = vshrl.u32 %v987, 7
    %v989 = vsub.s32 5, %v988
    %v990 = vrot.slane %v42, %v989
    %v991 = vadd.f32 %v985, %v990
    %v992 = vadd.f32 %v986, %v990
    %v993 = vld [vmem:[#allocation5 + $0x40] sm:$0xff]
    %v994 = vld [vmem:[#allocation5 + $0x50] sm:$0xff]
    %v995 = vld [vmem:[#allocation5 + $0x60] sm:$0xff]
    %v996 = vld [vmem:[#allocation5 + $0x70] sm:$0xff]
    %v997 = vlaneseq
    %v998 = vshrl.u32 %v997, 7
    %v999 = vsub.s32 2, %v998
    %v1000 = vrot.slane %v42, %v999
    %v1002 = vsel %vm60, %v991, 0
    %v1005 = vsel %vm60, %v992, 0
    %1007 = vmatprep.subr.mxu0 0.0
    %1008 = vmatpush1.msra.mxu0 %v993
    %1009 = vmatprep.subr.mxu0 0.0
    %1010 = vmatpush1.msra.mxu0 %v994
    %1011 = vmatprep.subr.mxu0 0.0
    %1012 = vmatpush1.msra.mxu0 %v995
    %1013 = vmatprep.subr.mxu0 0.0
    %1014 = vmatpush1.msra.mxu0 %v996
    %1015 = vmatprep.subr.mxu0 0.0
    %1016 = vmatpush1.msra.mxu0 0.0
    %1017 = vmatprep.subr.mxu0 0.0
    %1018 = vmatpush1.msra.mxu0 0.0
    %1019 = vmatprep.subr.mxu0 0.0
    %1020 = vmatpush1.msra.mxu0 0.0
    %1021 = vmatprep.subr.mxu0 0.0
    %1022 = vmatpush1.msra.mxu0 0.0
    %1023 = vmatprep.subr.mxu0 0.0
    %1024 = vmatpush1.msra.mxu0 0.0
    %1025 = vmatprep.subr.mxu0 0.0
    %1026 = vmatpush1.msra.mxu0 0.0
    %1027 = vmatprep.subr.mxu0 0.0
    %1028 = vmatpush1.msra.mxu0 0.0
    %1029 = vmatprep.subr.mxu0 0.0
    %1030 = vmatpush1.msra.mxu0 0.0
    %1031 = vmatprep.subr.mxu0 0.0
    %1032 = vmatpush1.msra.mxu0 0.0
    %1033 = vmatprep.subr.mxu0 0.0
    %1034 = vmatpush1.msra.mxu0 0.0
    %1035 = vmatprep.subr.mxu0 0.0
    %1036 = vmatpush1.msra.mxu0 0.0
    %1037 = vmatprep.subr.mxu0 0.0
    %1038 = vmatpush1.msra.mxu0 0.0
    %1039 = vmatprep.subr.mxu0 0.0
    %1040 = vmatpush1.msra.mxu0 0.0
    %1041 = vmatprep.subr.mxu0 0.0
    %1042 = vmatpush1.msra.mxu0 0.0
    %1043 = vmatprep.subr.mxu0 0.0
    %1044 = vmatpush1.msra.mxu0 0.0
    %1045 = vmatprep.subr.mxu0 0.0
    %1046 = vmatpush1.msra.mxu0 0.0
    %1047 = vmatprep.subr.mxu0 0.0
    %1048 = vmatpush1.msra.mxu0 0.0
    %1049 = vmatprep.subr.mxu0 0.0
    %1050 = vmatpush1.msra.mxu0 0.0
    %1051 = vmatprep.subr.mxu0 0.0
    %1052 = vmatpush1.msra.mxu0 0.0
    %1053 = vmatprep.subr.mxu0 0.0
    %1054 = vmatpush1.msra.mxu0 0.0
    %1055 = vmatprep.subr.mxu0 0.0
    %1056 = vmatpush1.msra.mxu0 0.0
    %1057 = vmatprep.subr.mxu0 0.0
    %1058 = vmatpush1.msra.mxu0 0.0
    %1059 = vmatprep.subr.mxu0 0.0
    %1060 = vmatpush1.msra.mxu0 0.0
    %1061 = vmatprep.subr.mxu0 0.0
    %1062 = vmatpush1.msra.mxu0 0.0
    %1063 = vmatprep.subr.mxu0 0.0
    %1064 = vmatpush1.msra.mxu0 0.0
    %1065 = vmatprep.subr.mxu0 0.0
    %1066 = vmatpush1.msra.mxu0 0.0
    %1067 = vmatprep.subr.mxu0 0.0
    %1068 = vmatpush1.msra.mxu0 0.0
    %1069 = vmatprep.subr.mxu0 0.0
    %1070 = vmatpush1.msra.mxu0 0.0
    %1071 = vmatprep.mubr.f32.mxu0 0.0
    %1072 = vmatmul.mubr.f32.gmra.mrb[0].mxu0 %v1002
    %v1073 = vpop.f32.mrb[0].mxu0
    %v1074 = vadd.f32 %v1000, %v1073
    %v1075 = vpop.f32.mrb[0].mxu0
    %1076 = vmatprep.mubr.f32.mxu0 0.0
    %1077 = vmatmul.mubr.f32.gmra.mrb[0].mxu0 %v1005
    %v1078 = vpop.f32.mrb[0].mxu0
    %v1079 = vadd.f32 %v1000, %v1078
    %v1080 = vpop.f32.mrb[0].mxu0
    %1081 = vdwg.mxu0
    %v1082 = vmax.f32 %v1074, 0.0
    %v1083 = vmax.f32 %v1079, 0.0
    %v1084 = vxor.u32 %v1074, 2147483648
    %v1085 = vxor.u32 %v1079, 2147483648
    %v1086 = vmul.f32 %v1084, 1.442695
    %v1087 = vpow.pop %v1086
    %v1088 = vmul.f32 %v1085, 1.442695
    %v1089 = vpow.pop %v1088
    %v1090 = vadd.f32 %v1087, 1.0
    %v1091 = vadd.f32 %v1089, 1.0
    %v1092 = vrcp.pop %v1090
    %v1093 = vmul.f32 1.0, %v1092
    %v1094 = vrcp.pop %v1091
    %v1095 = vmul.f32 1.0, %v1094
    %v1096 = vld [vmem:[#allocation5 + $0x80] sm:$0xff]
    %v1097 = vld [vmem:[#allocation5 + $0x90] sm:$0xff]
    %v1098 = vld [vmem:[#allocation5 + $0xa0] sm:$0xff]
    %v1099 = vld [vmem:[#allocation5 + $0xb0] sm:$0xff]
    %v1100 = vld [vmem:[#allocation5 + $0xc0] sm:$0xff]
    %v1101 = vld [vmem:[#allocation5 + $0xd0] sm:$0xff]
    %v1102 = vld [vmem:[#allocation5 + $0xe0] sm:$0xff]
    %v1103 = vld [vmem:[#allocation5 + $0xf0] sm:$0xff]
    %v1104 = vlaneseq
    %v1105 = vshrl.u32 %v1104, 7
    %v1106 = vsub.s32 3, %v1105
    %v1107 = vrot.slane %v42, %v1106
    %vm1108 = vcmask 523264
    %v1110 = vsel %vm1108, %v1082, 0
    %v1113 = vsel %vm1108, %v1083, 0
    %1115 = vmatprep.subr.mxu0 0.0
    %1116 = vmatpush1.msra.mxu0 %v1096
    %1117 = vmatprep.subr.mxu0 0.0
    %1118 = vmatpush1.msra.mxu0 %v1097
    %1119 = vmatprep.subr.mxu0 0.0
    %1120 = vmatpush1.msra.mxu0 %v1098
    %1121 = vmatprep.subr.mxu0 0.0
    %1122 = vmatpush1.msra.mxu0 %v1099
    %1123 = vmatprep.subr.mxu0 0.0
    %1124 = vmatpush1.msra.mxu0 %v1100
    %1125 = vmatprep.subr.mxu0 0.0
    %1126 = vmatpush1.msra.mxu0 %v1101
    %1127 = vmatprep.subr.mxu0 0.0
    %1128 = vmatpush1.msra.mxu0 %v1102
    %1129 = vmatprep.subr.mxu0 0.0
    %1130 = vmatpush1.msra.mxu0 %v1103
    %1131 = vmatprep.subr.mxu0 0.0
    %1132 = vmatpush1.msra.mxu0 0.0
    %1133 = vmatprep.subr.mxu0 0.0
    %1134 = vmatpush1.msra.mxu0 0.0
    %1135 = vmatprep.subr.mxu0 0.0
    %1136 = vmatpush1.msra.mxu0 0.0
    %1137 = vmatprep.subr.mxu0 0.0
    %1138 = vmatpush1.msra.mxu0 0.0
    %1139 = vmatprep.subr.mxu0 0.0
    %1140 = vmatpush1.msra.mxu0 0.0
    %1141 = vmatprep.subr.mxu0 0.0
    %1142 = vmatpush1.msra.mxu0 0.0
    %1143 = vmatprep.subr.mxu0 0.0
    %1144 = vmatpush1.msra.mxu0 0.0
    %1145 = vmatprep.subr.mxu0 0.0
    %1146 = vmatpush1.msra.mxu0 0.0
    %1147 = vmatprep.subr.mxu0 0.0
    %1148 = vmatpush1.msra.mxu0 0.0
    %1149 = vmatprep.subr.mxu0 0.0
    %1150 = vmatpush1.msra.mxu0 0.0
    %1151 = vmatprep.subr.mxu0 0.0
    %1152 = vmatpush1.msra.mxu0 0.0
    %1153 = vmatprep.subr.mxu0 0.0
    %1154 = vmatpush1.msra.mxu0 0.0
    %1155 = vmatprep.subr.mxu0 0.0
    %1156 = vmatpush1.msra.mxu0 0.0
    %1157 = vmatprep.subr.mxu0 0.0
    %1158 = vmatpush1.msra.mxu0 0.0
    %1159 = vmatprep.subr.mxu0 0.0
    %1160 = vmatpush1.msra.mxu0 0.0
    %1161 = vmatprep.subr.mxu0 0.0
    %1162 = vmatpush1.msra.mxu0 0.0
    %1163 = vmatprep.subr.mxu0 0.0
    %1164 = vmatpush1.msra.mxu0 0.0
    %1165 = vmatprep.subr.mxu0 0.0
    %1166 = vmatpush1.msra.mxu0 0.0
    %1167 = vmatprep.subr.mxu0 0.0
    %1168 = vmatpush1.msra.mxu0 0.0
    %1169 = vmatprep.subr.mxu0 0.0
    %1170 = vmatpush1.msra.mxu0 0.0
    %1171 = vmatprep.subr.mxu0 0.0
    %1172 = vmatpush1.msra.mxu0 0.0
    %1173 = vmatprep.subr.mxu0 0.0
    %1174 = vmatpush1.msra.mxu0 0.0
    %1175 = vmatprep.subr.mxu0 0.0
    %1176 = vmatpush1.msra.mxu0 0.0
    %1177 = vmatprep.subr.mxu0 0.0
    %1178 = vmatpush1.msra.mxu0 0.0
    %1179 = vmatprep.mubr.f32.mxu0 0.0
    %1180 = vmatmul.mubr.f32.gmra.mrb[0].mxu0 %v1110
    %v1181 = vpop.f32.mrb[0].mxu0
    %v1182 = vadd.f32 %v1107, %v1181
    %v1183 = vpop.f32.mrb[0].mxu0
    %1184 = vmatprep.mubr.f32.mxu0 0.0
    %1185 = vmatmul.mubr.f32.gmra.mrb[0].mxu0 %v1113
    %v1186 = vpop.f32.mrb[0].mxu0
    %v1187 = vadd.f32 %v1107, %v1186
    %v1188 = vpop.f32.mrb[0].mxu0
    %1189 = vdwg.mxu0
    %1192 = vrot.lane.b32.xlu0 %v1093, 64
    %v1193 = vpop.permute.xlu0 %1192
    %1194 = vrot.lane.b32.xlu0 %v1095, 64
    %v1195 = vpop.permute.xlu0 %1194
    %v1198 = vmul.f32 %v1182, %v1193
    %v1199 = vmul.f32 %v1187, %v1195
    %v1200 = vadd.f32 %v991, %v1198
    %v1201 = vadd.f32 %v992, %v1199
    %v1202 = vsel %vm60, %v1200, 0.0
    %1203 = vadd.xlane.f32.xlu0 %v1202
    %v1204 = vpop.xlane.xlu0 %1203
    %v1205 = vsel %vm60, %v1201, 0.0
    %1206 = vadd.xlane.f32.xlu0 %v1205
    %v1207 = vpop.xlane.xlu0 %1206
    %v1208 = vmul.f32 %v1204, %v960
    %v1209 = vmul.f32 %v1207, %v960
    %v1210 = vsub.f32 %v1200, %v1208
    %v1211 = vsub.f32 %v1201, %v1209
    %v1212 = vmul.f32 %v1210, %v1210
    %v1213 = vmul.f32 %v1211, %v1211
    %v1214 = vsel %vm60, %v1212, 0.0
    %1215 = vadd.xlane.f32.xlu0 %v1214
    %v1216 = vpop.xlane.xlu0 %1215
    %v1217 = vsel %vm60, %v1213, 0.0
    %1218 = vadd.xlane.f32.xlu0 %v1217
    %v1219 = vpop.xlane.xlu0 %1218
    %v1220 = vmul.f32 %v1216, %v960
    %v1221 = vmul.f32 %v1219, %v960
    %v1222 = vadd.f32 %v1220, 1e-05
    %v1223 = vadd.f32 %v1221, 1e-05
    %v1224 = vrsqrt.pop %v1222
    %v1225 = vrsqrt.pop %v1223
    %v1226 = vmul.f32 %v1210, %v1224
    %v1227 = vmul.f32 %v1211, %v1225
    %v1228 = vlaneseq
    %v1229 = vshrl.u32 %v1228, 7
    %v1230 = vsub.s32 6, %v1229
    %v1231 = vrot.slane %v42, %v1230
    %v1232 = vmul.f32 %v1226, %v1231
    %v1233 = vmul.f32 %v1227, %v1231
    %v1234 = vlaneseq
    %v1235 = vshrl.u32 %v1234, 7
    %v1236 = vsub.s32 7, %v1235
    %v1237 = vrot.slane %v42, %v1236
    %v1238 = vadd.f32 %v1232, %v1237
    %v1239 = vadd.f32 %v1233, %v1237
    %1240 = vst.msk [vmem:[#allocation7] sm:$0xff] %vm60, %v1238
    %1241 = vst.msk [vmem:[#allocation7 + $0x8] sm:$0xff] %vm60, %v1239
    // Predicated region
    $region18: #{tpu_custom_call.1} parent=1 // pred_check
      _
    $region19: #{tpu_custom_call.1} parent=1 // pred_check_branch
      %1243 = sbr.rel (0) target = $region21
    $region20: #{tpu_custom_call.1} parent=1 // pred_region
      %s1245 = ssub.s32 256, 256
      %1246 = vsyncadd [#allocation4], %s1245
      %s1247 = sshll.u32 [#allocation7], 4
      %s1248 = int_to_ptr.vmem [resolvable:$true] %s1247
      %1253 = dma.vmem_to_hbm [thread:$0]  %s1248, 256, %s2, [#allocation4], 128, 128, 8
    $region21: #{tpu_custom_call.1} parent=1 // pred_fallthru
      _
    // Predicated region
    $region22: #{tpu_custom_call.1} parent=1 // pred_check
      _
    $region23: #{tpu_custom_call.1} parent=1 // pred_check_branch
      %1255 = sbr.rel (0) target = $region25
    $region24: #{tpu_custom_call.1} parent=1 // pred_region
      %1256 = dma.done [#allocation4], 256
    $region25: #{tpu_custom_call.1} parent=1 // pred_fallthru
      _
    %1257 = vsyncpa [#allocation3], 1
    %1258 = vsyncpa [#allocation6], 1
    %1259 = vsyncpa [#allocation4], 1

</llo_original>
